<compile_context>
chip_gen: v5e
topology: v5e:2x2
jax: 0.10.0
libtpu: 0.0.40
codegen_flags: <defaults>
</compile_context>

<pallas_src>
import math
import jax
import jax.numpy as jnp
from jax import lax
from jax.experimental import pallas as pl
from jax.experimental.pallas import tpu as pltpu

S      = 8            # sequence length (number of words)
D_IN   = 300          # GloVe embedding dim
H      = 5            # LSTM hidden size per direction
H2     = 2 * H        # bidirectional width (10)
NGATES = 4            # i, f, g, o (PyTorch logical order)
GW     = NGATES * H2  # fused gate lane width (40)


def _mynn_kernel(x_ref,
                 wih0_ref, b0_ref, whh0_ref,
                 wih1_ref, b1_ref, whh1_ref,
                 wlin_ref, blin_ref,
                 o_ref):
    x = x_ref[...]                                              # (S, D_IN)

    # ---- constants hoisted once (JAX does not CSE broadcasts) ----
    lane_g = lax.broadcasted_iota(jnp.int32, (1, GW), 1)
    rev_mask_g = (lane_g % H2) >= H      # reverse-direction lanes of each gate block
    is_g_gate  = lane_g >= 3 * H2        # tanh (g) gate block, lanes 30:40
    # sigmoid(x) = 0.5*tanh(0.5*x) + 0.5  -> ONE EUP tanh covers all four gates
    act_scale = jnp.where(is_g_gate, 1.0, 0.5).astype(jnp.float32)   # (1, GW)
    act_shift = jnp.where(is_g_gate, 0.0, 0.5).astype(jnp.float32)   # (1, GW)
    lane_h = lax.broadcasted_iota(jnp.int32, (1, H2), 1)
    rev_mask_h = lane_h >= H             # reverse half of an [fwd|rev] hidden vector

    # Row reversal as an exact 0/1 anti-diagonal matmul (robust lowering, off the
    # critical path, used once per layer instead of per-step selects).
    rr = lax.broadcasted_iota(jnp.int32, (S, S), 0)
    cc = lax.broadcasted_iota(jnp.int32, (S, S), 1)
    p_rev = (rr + cc == S - 1).astype(jnp.float32)              # (S, S) permutation

    def run_layer(gin, whh_bd, collect_hist):
        """One bidirectional LSTM layer, both directions per step.

        gin: (S, GW) fused input-gate preactivations (forward time order).
        Returns (hist (S,H2) or None, elementwise max over steps (1,H2))."""
        # Direction merge precomputed ONCE per layer: forward lanes read row t,
        # reverse lanes read row S-1-t.
        gin_rev = jnp.dot(p_rev, gin, preferred_element_type=jnp.float32)
        gin_sel = jnp.where(rev_mask_g, gin_rev, gin)           # (S, GW)

        h = jnp.zeros((1, H2), jnp.float32)
        c = jnp.zeros((1, H2), jnp.float32)
        m = jnp.full((1, H2), -jnp.inf, jnp.float32)
        rows = [None] * S
        for t in range(S):                                      # static unroll
            # single fused recurrent dot: (1, 2H) @ (2H, 4*2H)
            # TODO(synk): on v6e/v7x measure MXU round-trip latency of this matvec
            # against a VPU/XLU broadcast-multiply + sublane-reduce alternative.
            pre = gin_sel[t:t + 1, :] + jnp.dot(
                h, whh_bd, preferred_element_type=jnp.float32)
            tv  = jnp.tanh(pre * act_scale)          # one EUP op for all 4 gates
            act = tv * act_scale + act_shift         # [sig(i) sig(f) sig(o) tanh(g)]
            ig = act[:, 0:H2]
            fg = act[:, H2:2 * H2]
            og = act[:, 2 * H2:3 * H2]
            gg = act[:, 3 * H2:]
            c = fg * c + ig * gg
            h = og * jnp.tanh(c)
            m = jnp.maximum(m, h)
            if collect_hist:
                rows[t] = h
        if collect_hist:
            fwd_hist = jnp.concatenate(rows, axis=0)            # (S, H2) step order
            rev_hist = jnp.dot(p_rev, fwd_hist,
                               preferred_element_type=jnp.float32)  # reversed order
            hist = jnp.where(rev_mask_h, rev_hist, fwd_hist)    # [fwd(t) | rev(t)]
        else:
            hist = None
        return hist, m

    # ---- layer 0: single fused (S,300)@(300,40) input projection ----
    gin0 = jnp.dot(x, wih0_ref[...], preferred_element_type=jnp.float32) + b0_ref[...]
    h0, _ = run_layer(gin0, whh0_ref[...], True)

    # TODO(synk): nn.LSTM dropout=0.6 between layers only applies in training
    # mode; this implements the eval-mode forward (no dropout).
    gin1 = jnp.dot(h0, wih1_ref[...], preferred_element_type=jnp.float32) + b1_ref[...]
    _, m1 = run_layer(gin1, whh1_ref[...], False)

    # sigmoid(Linear_10->1(max_t h));  m1 is already [max fwd | max rev]
    y = jnp.dot(m1, wlin_ref[...], preferred_element_type=jnp.float32) + blin_ref[...]
    o_ref[...] = jax.nn.sigmoid(y)


def pack_params(params):
    """Host-side repack of logical (PyTorch-style, per-dir per-gate) weights into
    fused lane-dense layouts.  Call ONCE and cache; kernel column layout is
    gate-major (i, f, o, g), direction-minor (fwd, rev), each block H lanes."""
    wih0, whh0, b0, wih1, whh1, b1, wlin, blin = params
    korder = (0, 1, 3, 2)  # logical gate order is (i, f, g, o); kernel uses (i, f, o, g)

    def pack_ih(wih, b):
        cols_w, cols_b = [], []
        for gk in korder:
            for d in range(2):
                cols_w.append(wih[d, gk])          # (in_dim, H)
                cols_b.append(b[d, gk])            # (1, H)
        return (jnp.concatenate(cols_w, axis=-1),  # (in_dim, GW)
                jnp.concatenate(cols_b, axis=-1))  # (1, GW)

    def pack_hh(whh):
        blocks = []
        for gk in korder:
            cols = []
            for d in range(2):
                blk = jnp.zeros((H2, H), jnp.float32)
                blk = blk.at[d * H:(d + 1) * H, :].set(whh[d, gk])
                cols.append(blk)
            blocks.append(jnp.concatenate(cols, axis=-1))   # (H2, H2)
        return jnp.concatenate(blocks, axis=-1)             # (H2, GW) block-diag

    wih0_f, b0_f = pack_ih(wih0, b0)
    wih1_f, b1_f = pack_ih(wih1, b1)
    return (wih0_f, b0_f, pack_hh(whh0),
            wih1_f, b1_f, pack_hh(whh1),
            wlin, blin)


_VMEM_SPEC = pl.BlockSpec(memory_space=pltpu.MemorySpace.VMEM)

_pallas_forward = pl.pallas_call(
    _mynn_kernel,
    out_shape=jax.ShapeDtypeStruct((1, 1), jnp.float32),
    in_specs=[_VMEM_SPEC] * 9,
    out_specs=_VMEM_SPEC,
)


@jax.jit
def mynn_forward_packed(x, packed):
    """Jitted forward taking pre-packed weights (pack once, reuse every call)."""
    return _pallas_forward(x, *packed)


def mynn_forward(x, params):
    """Convenience path (re-packs every call); prefer pack_params once +
    mynn_forward_packed for repeated calls."""
    return mynn_forward_packed(x, pack_params(params))


def init_params(key):
    """Deterministic synthetic init (PyTorch-style U(-1/sqrt(H), 1/sqrt(H))),
    in the logical per-direction / per-gate layout (gate order i, f, g, o).
    NOTE: b* is the pre-summed b_ih + b_hh (as nn.LSTM adds both)."""
    ks = jax.random.split(key, 8)
    k = 1.0 / math.sqrt(H)

    def u(kk, shape, bound):
        return jax.random.uniform(kk, shape, jnp.float32, -bound, bound)

    wih0 = u(ks[0], (2, NGATES, D_IN, H), k)   # layer 0 input weights (both dirs)
    whh0 = u(ks[1], (2, NGATES, H, H), k)      # layer 0 recurrent weights
    b0   = u(ks[2], (2, NGATES, 1, H), k)      # layer 0 bias (b_ih + b_hh)
    wih1 = u(ks[3], (2, NGATES, H2, H), k)     # layer 1 input weights
    whh1 = u(ks[4], (2, NGATES, H, H), k)
    b1   = u(ks[5], (2, NGATES, 1, H), k)
    kl = 1.0 / math.sqrt(H2)
    wlin = u(ks[6], (H2, 1), kl)               # nn.Linear(10, 1)
    blin = u(ks[7], (1, 1), kl)
    return (wih0, whh0, b0, wih1, whh1, b1, wlin, blin)


def reference_forward(x, params):
    """Pure-JAX reference mirroring PyTorch nn.LSTM(eval) semantics."""
    wih0, whh0, b0, wih1, whh1, b1, wlin, blin = params

    def run_layer(xin, wih, whh, b):
        n = xin.shape[0]

        def direction(d, reverse):
            h = jnp.zeros((1, H), jnp.float32)
            c = jnp.zeros((1, H), jnp.float32)
            outs = [None] * n
            order = range(n - 1, -1, -1) if reverse else range(n)
            for t in order:
                xt = xin[t:t + 1]
                pre = [xt @ wih[d, g] + h @ whh[d, g] + b[d, g]
                       for g in range(NGATES)]
                ig = jax.nn.sigmoid(pre[0])
                fg = jax.nn.sigmoid(pre[1])
                gg = jnp.tanh(pre[2])
                og = jax.nn.sigmoid(pre[3])
                c = fg * c + ig * gg
                h = og * jnp.tanh(c)
                outs[t] = h[0]
            return jnp.stack(outs, 0)              # (n, H)

        return jnp.concatenate([direction(0, False), direction(1, True)], -1)

    h0 = run_layer(x, wih0, whh0, b0)              # (S, 2H)
    h1 = run_layer(h0, wih1, whh1, b1)             # (S, 2H)
    feat = jnp.max(h1, axis=0, keepdims=True)      # (1, 2H)  == out.max(1)[0]
    return jax.nn.sigmoid(feat @ wlin + blin)      # (1, 1)


if __name__ == "__main__":
    key = jax.random.PRNGKey(0)
    kx, kp = jax.random.split(key)
    x = jax.random.normal(kx, (S, D_IN), jnp.float32)   # "GloVe" word embeddings
    params = init_params(kp)

    packed = pack_params(params)          # hoisted: packed ONCE, reused per call

    out = mynn_forward_packed(x, packed)
    out = jax.block_until_ready(out)

    ref = reference_forward(x, params)
    assert out.shape == (1, 1), out.shape
    assert jnp.allclose(out, ref, atol=1e-5, rtol=1e-5), (out, ref)
    print("KERNEL_OK")
</pallas_src>

<mosaic_0001>
module attributes {stable_mosaic.version = 11 : i64} {
  func.func @_mynn_kernel(%arg0: memref<8x300xf32, #tpu.memory_space<vmem>>, %arg1: memref<300x40xf32, #tpu.memory_space<vmem>>, %arg2: memref<1x40xf32, #tpu.memory_space<vmem>>, %arg3: memref<10x40xf32, #tpu.memory_space<vmem>>, %arg4: memref<10x40xf32, #tpu.memory_space<vmem>>, %arg5: memref<1x40xf32, #tpu.memory_space<vmem>>, %arg6: memref<10x40xf32, #tpu.memory_space<vmem>>, %arg7: memref<10x1xf32, #tpu.memory_space<vmem>>, %arg8: memref<1x1xf32, #tpu.memory_space<vmem>>, %arg9: memref<1x1xf32, #tpu.memory_space<vmem>>) attributes {dimension_semantics = [], scalar_prefetch = 0 : i64, scratch_operands = 0 : i64, tpu.core_type = #tpu.core_type<tc>} {
    %c0 = arith.constant 0 : index
    %c0_0 = arith.constant 0 : index
    %0 = vector.load %arg0[%c0, %c0_0] : memref<8x300xf32, #tpu.memory_space<vmem>>, vector<8x300xf32>
    %1 = tpu.iota {dimensions = array<i32: 1>} : vector<1x40xi32>
    %c10_i32 = arith.constant 10 : i32
    %c0_i32 = arith.constant 0 : i32
    %2 = arith.cmpi eq, %c10_i32, %c0_i32 : i32
    %c1_i32 = arith.constant 1 : i32
    %3 = arith.select %2, %c1_i32, %c10_i32 : i32
    %4 = vector.broadcast %3 : i32 to vector<1x40xi32>
    %5 = arith.remsi %1, %4 : vector<1x40xi32>
    %c0_i32_1 = arith.constant 0 : i32
    %6 = vector.broadcast %c0_i32_1 : i32 to vector<1x40xi32>
    %7 = arith.cmpi ne, %5, %6 : vector<1x40xi32>
    %c0_i32_2 = arith.constant 0 : i32
    %8 = vector.broadcast %c0_i32_2 : i32 to vector<1x40xi32>
    %9 = arith.cmpi slt, %5, %8 : vector<1x40xi32>
    %c0_i32_3 = arith.constant 0 : i32
    %10 = arith.cmpi slt, %3, %c0_i32_3 : i32
    %11 = vector.broadcast %10 : i1 to vector<1x40xi1>
    %12 = vector.broadcast %11 : vector<1x40xi1> to vector<1x40xi1>
    %13 = arith.xori %9, %12 : vector<1x40xi1>
    %14 = arith.andi %13, %7 : vector<1x40xi1>
    %15 = vector.broadcast %3 : i32 to vector<1x40xi32>
    %16 = arith.addi %5, %15 : vector<1x40xi32>
    %17 = arith.select %14, %16, %5 : vector<1x40xi1>, vector<1x40xi32>
    %c5_i32 = arith.constant 5 : i32
    %18 = vector.broadcast %c5_i32 : i32 to vector<1x40xi32>
    %19 = arith.cmpi sge, %17, %18 : vector<1x40xi32>
    %c30_i32 = arith.constant 30 : i32
    %20 = vector.broadcast %c30_i32 : i32 to vector<1x40xi32>
    %21 = arith.cmpi sge, %1, %20 : vector<1x40xi32>
    %cst = arith.constant 1.000000e+00 : f32
    %cst_4 = arith.constant 5.000000e-01 : f32
    %22 = vector.broadcast %cst : f32 to vector<1x40xf32>
    %23 = vector.broadcast %cst_4 : f32 to vector<1x40xf32>
    %24 = arith.select %21, %22, %23 : vector<1x40xi1>, vector<1x40xf32>
    %cst_5 = arith.constant 0.000000e+00 : f32
    %cst_6 = arith.constant 5.000000e-01 : f32
    %25 = vector.broadcast %cst_5 : f32 to vector<1x40xf32>
    %26 = vector.broadcast %cst_6 : f32 to vector<1x40xf32>
    %27 = arith.select %21, %25, %26 : vector<1x40xi1>, vector<1x40xf32>
    %28 = tpu.iota {dimensions = array<i32: 1>} : vector<1x10xi32>
    %c5_i32_7 = arith.constant 5 : i32
    %29 = vector.broadcast %c5_i32_7 : i32 to vector<1x10xi32>
    %30 = arith.cmpi sge, %28, %29 : vector<1x10xi32>
    %31 = tpu.iota {dimensions = array<i32: 0>} : vector<8x8xi32>
    %32 = tpu.iota {dimensions = array<i32: 1>} : vector<8x8xi32>
    %33 = arith.addi %31, %32 : vector<8x8xi32>
    %c7_i32 = arith.constant 7 : i32
    %34 = vector.broadcast %c7_i32 : i32 to vector<8x8xi32>
    %35 = arith.cmpi eq, %33, %34 : vector<8x8xi32>
    %36 = arith.extui %35 : vector<8x8xi1> to vector<8x8xi32>
    %37 = arith.sitofp %36 : vector<8x8xi32> to vector<8x8xf32>
    %c0_8 = arith.constant 0 : index
    %c0_9 = arith.constant 0 : index
    %38 = vector.load %arg1[%c0_8, %c0_9] : memref<300x40xf32, #tpu.memory_space<vmem>>, vector<300x40xf32>
    %cst_10 = arith.constant dense<0.000000e+00> : vector<8x40xf32>
    %39 = tpu.matmul %0, %38, %cst_10 {dimension_numbers = #tpu.dot_dimension_numbers<[1], [0], [0], [1], [0, 0, 1, 1], [], []>} : vector<8x300xf32>, vector<300x40xf32>, vector<8x40xf32> -> vector<8x40xf32>
    %c0_11 = arith.constant 0 : index
    %c0_12 = arith.constant 0 : index
    %40 = vector.load %arg2[%c0_11, %c0_12] : memref<1x40xf32, #tpu.memory_space<vmem>>, vector<1x40xf32>
    %41 = vector.broadcast %40 : vector<1x40xf32> to vector<8x40xf32>
    %42 = arith.addf %39, %41 : vector<8x40xf32>
    %c0_13 = arith.constant 0 : index
    %c0_14 = arith.constant 0 : index
    %43 = vector.load %arg3[%c0_13, %c0_14] : memref<10x40xf32, #tpu.memory_space<vmem>>, vector<10x40xf32>
    %cst_15 = arith.constant dense<0.000000e+00> : vector<8x40xf32>
    %44 = tpu.matmul %37, %42, %cst_15 {dimension_numbers = #tpu.dot_dimension_numbers<[1], [0], [0], [1], [0, 0, 1, 1], [], []>} : vector<8x8xf32>, vector<8x40xf32>, vector<8x40xf32> -> vector<8x40xf32>
    %45 = vector.shape_cast %19 : vector<1x40xi1> to vector<1x40xi1>
    %46 = vector.broadcast %45 : vector<1x40xi1> to vector<8x40xi1>
    %47 = arith.select %46, %44, %42 : vector<8x40xi1>, vector<8x40xf32>
    %cst_16 = arith.constant 0.000000e+00 : f32
    %48 = vector.broadcast %cst_16 : f32 to vector<1x10xf32>
    %cst_17 = arith.constant 0.000000e+00 : f32
    %49 = vector.broadcast %cst_17 : f32 to vector<1x10xf32>
    %50 = vector.extract_strided_slice %47 {offsets = [0, 0], sizes = [1, 40], strides = [1, 1]} : vector<8x40xf32> to vector<1x40xf32>
    %cst_18 = arith.constant dense<0.000000e+00> : vector<1x40xf32>
    %51 = tpu.matmul %48, %43, %cst_18 {dimension_numbers = #tpu.dot_dimension_numbers<[1], [0], [0], [1], [0, 0, 1, 1], [], []>} : vector<1x10xf32>, vector<10x40xf32>, vector<1x40xf32> -> vector<1x40xf32>
    %52 = arith.addf %50, %51 : vector<1x40xf32>
    %53 = arith.mulf %52, %24 : vector<1x40xf32>
    %54 = math.tanh %53 : vector<1x40xf32>
    %55 = arith.mulf %54, %24 : vector<1x40xf32>
    %56 = arith.addf %55, %27 : vector<1x40xf32>
    %57 = vector.extract_strided_slice %56 {offsets = [0, 0], sizes = [1, 10], strides = [1, 1]} : vector<1x40xf32> to vector<1x10xf32>
    %58 = vector.extract_strided_slice %56 {offsets = [0, 10], sizes = [1, 10], strides = [1, 1]} : vector<1x40xf32> to vector<1x10xf32>
    %59 = vector.extract_strided_slice %56 {offsets = [0, 20], sizes = [1, 10], strides = [1, 1]} : vector<1x40xf32> to vector<1x10xf32>
    %60 = vector.extract_strided_slice %56 {offsets = [0, 30], sizes = [1, 10], strides = [1, 1]} : vector<1x40xf32> to vector<1x10xf32>
    %61 = arith.mulf %58, %49 : vector<1x10xf32>
    %62 = arith.mulf %57, %60 : vector<1x10xf32>
    %63 = arith.addf %61, %62 : vector<1x10xf32>
    %64 = math.tanh %63 : vector<1x10xf32>
    %65 = arith.mulf %59, %64 : vector<1x10xf32>
    %66 = vector.extract_strided_slice %47 {offsets = [1, 0], sizes = [1, 40], strides = [1, 1]} : vector<8x40xf32> to vector<1x40xf32>
    %cst_19 = arith.constant dense<0.000000e+00> : vector<1x40xf32>
    %67 = tpu.matmul %65, %43, %cst_19 {dimension_numbers = #tpu.dot_dimension_numbers<[1], [0], [0], [1], [0, 0, 1, 1], [], []>} : vector<1x10xf32>, vector<10x40xf32>, vector<1x40xf32> -> vector<1x40xf32>
    %68 = arith.addf %66, %67 : vector<1x40xf32>
    %69 = arith.mulf %68, %24 : vector<1x40xf32>
    %70 = math.tanh %69 : vector<1x40xf32>
    %71 = arith.mulf %70, %24 : vector<1x40xf32>
    %72 = arith.addf %71, %27 : vector<1x40xf32>
    %73 = vector.extract_strided_slice %72 {offsets = [0, 0], sizes = [1, 10], strides = [1, 1]} : vector<1x40xf32> to vector<1x10xf32>
    %74 = vector.extract_strided_slice %72 {offsets = [0, 10], sizes = [1, 10], strides = [1, 1]} : vector<1x40xf32> to vector<1x10xf32>
    %75 = vector.extract_strided_slice %72 {offsets = [0, 20], sizes = [1, 10], strides = [1, 1]} : vector<1x40xf32> to vector<1x10xf32>
    %76 = vector.extract_strided_slice %72 {offsets = [0, 30], sizes = [1, 10], strides = [1, 1]} : vector<1x40xf32> to vector<1x10xf32>
    %77 = arith.mulf %74, %63 : vector<1x10xf32>
    %78 = arith.mulf %73, %76 : vector<1x10xf32>
    %79 = arith.addf %77, %78 : vector<1x10xf32>
    %80 = math.tanh %79 : vector<1x10xf32>
    %81 = arith.mulf %75, %80 : vector<1x10xf32>
    %82 = vector.extract_strided_slice %47 {offsets = [2, 0], sizes = [1, 40], strides = [1, 1]} : vector<8x40xf32> to vector<1x40xf32>
    %cst_20 = arith.constant dense<0.000000e+00> : vector<1x40xf32>
    %83 = tpu.matmul %81, %43, %cst_20 {dimension_numbers = #tpu.dot_dimension_numbers<[1], [0], [0], [1], [0, 0, 1, 1], [], []>} : vector<1x10xf32>, vector<10x40xf32>, vector<1x40xf32> -> vector<1x40xf32>
    %84 = arith.addf %82, %83 : vector<1x40xf32>
    %85 = arith.mulf %84, %24 : vector<1x40xf32>
    %86 = math.tanh %85 : vector<1x40xf32>
    %87 = arith.mulf %86, %24 : vector<1x40xf32>
    %88 = arith.addf %87, %27 : vector<1x40xf32>
    %89 = vector.extract_strided_slice %88 {offsets = [0, 0], sizes = [1, 10], strides = [1, 1]} : vector<1x40xf32> to vector<1x10xf32>
    %90 = vector.extract_strided_slice %88 {offsets = [0, 10], sizes = [1, 10], strides = [1, 1]} : vector<1x40xf32> to vector<1x10xf32>
    %91 = vector.extract_strided_slice %88 {offsets = [0, 20], sizes = [1, 10], strides = [1, 1]} : vector<1x40xf32> to vector<1x10xf32>
    %92 = vector.extract_strided_slice %88 {offsets = [0, 30], sizes = [1, 10], strides = [1, 1]} : vector<1x40xf32> to vector<1x10xf32>
    %93 = arith.mulf %90, %79 : vector<1x10xf32>
    %94 = arith.mulf %89, %92 : vector<1x10xf32>
    %95 = arith.addf %93, %94 : vector<1x10xf32>
    %96 = math.tanh %95 : vector<1x10xf32>
    %97 = arith.mulf %91, %96 : vector<1x10xf32>
    %98 = vector.extract_strided_slice %47 {offsets = [3, 0], sizes = [1, 40], strides = [1, 1]} : vector<8x40xf32> to vector<1x40xf32>
    %cst_21 = arith.constant dense<0.000000e+00> : vector<1x40xf32>
    %99 = tpu.matmul %97, %43, %cst_21 {dimension_numbers = #tpu.dot_dimension_numbers<[1], [0], [0], [1], [0, 0, 1, 1], [], []>} : vector<1x10xf32>, vector<10x40xf32>, vector<1x40xf32> -> vector<1x40xf32>
    %100 = arith.addf %98, %99 : vector<1x40xf32>
    %101 = arith.mulf %100, %24 : vector<1x40xf32>
    %102 = math.tanh %101 : vector<1x40xf32>
    %103 = arith.mulf %102, %24 : vector<1x40xf32>
    %104 = arith.addf %103, %27 : vector<1x40xf32>
    %105 = vector.extract_strided_slice %104 {offsets = [0, 0], sizes = [1, 10], strides = [1, 1]} : vector<1x40xf32> to vector<1x10xf32>
    %106 = vector.extract_strided_slice %104 {offsets = [0, 10], sizes = [1, 10], strides = [1, 1]} : vector<1x40xf32> to vector<1x10xf32>
    %107 = vector.extract_strided_slice %104 {offsets = [0, 20], sizes = [1, 10], strides = [1, 1]} : vector<1x40xf32> to vector<1x10xf32>
    %108 = vector.extract_strided_slice %104 {offsets = [0, 30], sizes = [1, 10], strides = [1, 1]} : vector<1x40xf32> to vector<1x10xf32>
    %109 = arith.mulf %106, %95 : vector<1x10xf32>
    %110 = arith.mulf %105, %108 : vector<1x10xf32>
    %111 = arith.addf %109, %110 : vector<1x10xf32>
    %112 = math.tanh %111 : vector<1x10xf32>
    %113 = arith.mulf %107, %112 : vector<1x10xf32>
    %114 = vector.extract_strided_slice %47 {offsets = [4, 0], sizes = [1, 40], strides = [1, 1]} : vector<8x40xf32> to vector<1x40xf32>
    %cst_22 = arith.constant dense<0.000000e+00> : vector<1x40xf32>
    %115 = tpu.matmul %113, %43, %cst_22 {dimension_numbers = #tpu.dot_dimension_numbers<[1], [0], [0], [1], [0, 0, 1, 1], [], []>} : vector<1x10xf32>, vector<10x40xf32>, vector<1x40xf32> -> vector<1x40xf32>
    %116 = arith.addf %114, %115 : vector<1x40xf32>
    %117 = arith.mulf %116, %24 : vector<1x40xf32>
    %118 = math.tanh %117 : vector<1x40xf32>
    %119 = arith.mulf %118, %24 : vector<1x40xf32>
    %120 = arith.addf %119, %27 : vector<1x40xf32>
    %121 = vector.extract_strided_slice %120 {offsets = [0, 0], sizes = [1, 10], strides = [1, 1]} : vector<1x40xf32> to vector<1x10xf32>
    %122 = vector.extract_strided_slice %120 {offsets = [0, 10], sizes = [1, 10], strides = [1, 1]} : vector<1x40xf32> to vector<1x10xf32>
    %123 = vector.extract_strided_slice %120 {offsets = [0, 20], sizes = [1, 10], strides = [1, 1]} : vector<1x40xf32> to vector<1x10xf32>
    %124 = vector.extract_strided_slice %120 {offsets = [0, 30], sizes = [1, 10], strides = [1, 1]} : vector<1x40xf32> to vector<1x10xf32>
    %125 = arith.mulf %122, %111 : vector<1x10xf32>
    %126 = arith.mulf %121, %124 : vector<1x10xf32>
    %127 = arith.addf %125, %126 : vector<1x10xf32>
    %128 = math.tanh %127 : vector<1x10xf32>
    %129 = arith.mulf %123, %128 : vector<1x10xf32>
    %130 = vector.extract_strided_slice %47 {offsets = [5, 0], sizes = [1, 40], strides = [1, 1]} : vector<8x40xf32> to vector<1x40xf32>
    %cst_23 = arith.constant dense<0.000000e+00> : vector<1x40xf32>
    %131 = tpu.matmul %129, %43, %cst_23 {dimension_numbers = #tpu.dot_dimension_numbers<[1], [0], [0], [1], [0, 0, 1, 1], [], []>} : vector<1x10xf32>, vector<10x40xf32>, vector<1x40xf32> -> vector<1x40xf32>
    %132 = arith.addf %130, %131 : vector<1x40xf32>
    %133 = arith.mulf %132, %24 : vector<1x40xf32>
    %134 = math.tanh %133 : vector<1x40xf32>
    %135 = arith.mulf %134, %24 : vector<1x40xf32>
    %136 = arith.addf %135, %27 : vector<1x40xf32>
    %137 = vector.extract_strided_slice %136 {offsets = [0, 0], sizes = [1, 10], strides = [1, 1]} : vector<1x40xf32> to vector<1x10xf32>
    %138 = vector.extract_strided_slice %136 {offsets = [0, 10], sizes = [1, 10], strides = [1, 1]} : vector<1x40xf32> to vector<1x10xf32>
    %139 = vector.extract_strided_slice %136 {offsets = [0, 20], sizes = [1, 10], strides = [1, 1]} : vector<1x40xf32> to vector<1x10xf32>
    %140 = vector.extract_strided_slice %136 {offsets = [0, 30], sizes = [1, 10], strides = [1, 1]} : vector<1x40xf32> to vector<1x10xf32>
    %141 = arith.mulf %138, %127 : vector<1x10xf32>
    %142 = arith.mulf %137, %140 : vector<1x10xf32>
    %143 = arith.addf %141, %142 : vector<1x10xf32>
    %144 = math.tanh %143 : vector<1x10xf32>
    %145 = arith.mulf %139, %144 : vector<1x10xf32>
    %146 = vector.extract_strided_slice %47 {offsets = [6, 0], sizes = [1, 40], strides = [1, 1]} : vector<8x40xf32> to vector<1x40xf32>
    %cst_24 = arith.constant dense<0.000000e+00> : vector<1x40xf32>
    %147 = tpu.matmul %145, %43, %cst_24 {dimension_numbers = #tpu.dot_dimension_numbers<[1], [0], [0], [1], [0, 0, 1, 1], [], []>} : vector<1x10xf32>, vector<10x40xf32>, vector<1x40xf32> -> vector<1x40xf32>
    %148 = arith.addf %146, %147 : vector<1x40xf32>
    %149 = arith.mulf %148, %24 : vector<1x40xf32>
    %150 = math.tanh %149 : vector<1x40xf32>
    %151 = arith.mulf %150, %24 : vector<1x40xf32>
    %152 = arith.addf %151, %27 : vector<1x40xf32>
    %153 = vector.extract_strided_slice %152 {offsets = [0, 0], sizes = [1, 10], strides = [1, 1]} : vector<1x40xf32> to vector<1x10xf32>
    %154 = vector.extract_strided_slice %152 {offsets = [0, 10], sizes = [1, 10], strides = [1, 1]} : vector<1x40xf32> to vector<1x10xf32>
    %155 = vector.extract_strided_slice %152 {offsets = [0, 20], sizes = [1, 10], strides = [1, 1]} : vector<1x40xf32> to vector<1x10xf32>
    %156 = vector.extract_strided_slice %152 {offsets = [0, 30], sizes = [1, 10], strides = [1, 1]} : vector<1x40xf32> to vector<1x10xf32>
    %157 = arith.mulf %154, %143 : vector<1x10xf32>
    %158 = arith.mulf %153, %156 : vector<1x10xf32>
    %159 = arith.addf %157, %158 : vector<1x10xf32>
    %160 = math.tanh %159 : vector<1x10xf32>
    %161 = arith.mulf %155, %160 : vector<1x10xf32>
    %162 = vector.extract_strided_slice %47 {offsets = [7, 0], sizes = [1, 40], strides = [1, 1]} : vector<8x40xf32> to vector<1x40xf32>
    %cst_25 = arith.constant dense<0.000000e+00> : vector<1x40xf32>
    %163 = tpu.matmul %161, %43, %cst_25 {dimension_numbers = #tpu.dot_dimension_numbers<[1], [0], [0], [1], [0, 0, 1, 1], [], []>} : vector<1x10xf32>, vector<10x40xf32>, vector<1x40xf32> -> vector<1x40xf32>
    %164 = arith.addf %162, %163 : vector<1x40xf32>
    %165 = arith.mulf %164, %24 : vector<1x40xf32>
    %166 = math.tanh %165 : vector<1x40xf32>
    %167 = arith.mulf %166, %24 : vector<1x40xf32>
    %168 = arith.addf %167, %27 : vector<1x40xf32>
    %169 = vector.extract_strided_slice %168 {offsets = [0, 0], sizes = [1, 10], strides = [1, 1]} : vector<1x40xf32> to vector<1x10xf32>
    %170 = vector.extract_strided_slice %168 {offsets = [0, 10], sizes = [1, 10], strides = [1, 1]} : vector<1x40xf32> to vector<1x10xf32>
    %171 = vector.extract_strided_slice %168 {offsets = [0, 20], sizes = [1, 10], strides = [1, 1]} : vector<1x40xf32> to vector<1x10xf32>
    %172 = vector.extract_strided_slice %168 {offsets = [0, 30], sizes = [1, 10], strides = [1, 1]} : vector<1x40xf32> to vector<1x10xf32>
    %173 = arith.mulf %170, %159 : vector<1x10xf32>
    %174 = arith.mulf %169, %172 : vector<1x10xf32>
    %175 = arith.addf %173, %174 : vector<1x10xf32>
    %176 = math.tanh %175 : vector<1x10xf32>
    %177 = arith.mulf %171, %176 : vector<1x10xf32>
    %178 = tpu.concatenate %65, %81, %97, %113, %129, %145, %161, %177 in 0 : vector<1x10xf32>, vector<1x10xf32>, vector<1x10xf32>, vector<1x10xf32>, vector<1x10xf32>, vector<1x10xf32>, vector<1x10xf32>, vector<1x10xf32> -> vector<8x10xf32>
    %cst_26 = arith.constant dense<0.000000e+00> : vector<8x10xf32>
    %179 = tpu.matmul %37, %178, %cst_26 {dimension_numbers = #tpu.dot_dimension_numbers<[1], [0], [0], [1], [0, 0, 1, 1], [], []>} : vector<8x8xf32>, vector<8x10xf32>, vector<8x10xf32> -> vector<8x10xf32>
    %180 = vector.shape_cast %30 : vector<1x10xi1> to vector<1x10xi1>
    %181 = vector.broadcast %180 : vector<1x10xi1> to vector<8x10xi1>
    %182 = arith.select %181, %179, %178 : vector<8x10xi1>, vector<8x10xf32>
    %c0_27 = arith.constant 0 : index
    %c0_28 = arith.constant 0 : index
    %183 = vector.load %arg4[%c0_27, %c0_28] : memref<10x40xf32, #tpu.memory_space<vmem>>, vector<10x40xf32>
    %cst_29 = arith.constant dense<0.000000e+00> : vector<8x40xf32>
    %184 = tpu.matmul %182, %183, %cst_29 {dimension_numbers = #tpu.dot_dimension_numbers<[1], [0], [0], [1], [0, 0, 1, 1], [], []>} : vector<8x10xf32>, vector<10x40xf32>, vector<8x40xf32> -> vector<8x40xf32>
    %c0_30 = arith.constant 0 : index
    %c0_31 = arith.constant 0 : index
    %185 = vector.load %arg5[%c0_30, %c0_31] : memref<1x40xf32, #tpu.memory_space<vmem>>, vector<1x40xf32>
    %186 = vector.broadcast %185 : vector<1x40xf32> to vector<8x40xf32>
    %187 = arith.addf %184, %186 : vector<8x40xf32>
    %c0_32 = arith.constant 0 : index
    %c0_33 = arith.constant 0 : index
    %188 = vector.load %arg6[%c0_32, %c0_33] : memref<10x40xf32, #tpu.memory_space<vmem>>, vector<10x40xf32>
    %cst_34 = arith.constant dense<0.000000e+00> : vector<8x40xf32>
    %189 = tpu.matmul %37, %187, %cst_34 {dimension_numbers = #tpu.dot_dimension_numbers<[1], [0], [0], [1], [0, 0, 1, 1], [], []>} : vector<8x8xf32>, vector<8x40xf32>, vector<8x40xf32> -> vector<8x40xf32>
    %190 = vector.shape_cast %19 : vector<1x40xi1> to vector<1x40xi1>
    %191 = vector.broadcast %190 : vector<1x40xi1> to vector<8x40xi1>
    %192 = arith.select %191, %189, %187 : vector<8x40xi1>, vector<8x40xf32>
    %cst_35 = arith.constant 0.000000e+00 : f32
    %193 = vector.broadcast %cst_35 : f32 to vector<1x10xf32>
    %cst_36 = arith.constant 0.000000e+00 : f32
    %194 = vector.broadcast %cst_36 : f32 to vector<1x10xf32>
    %cst_37 = arith.constant 0xFF800000 : f32
    %195 = vector.broadcast %cst_37 : f32 to vector<1x10xf32>
    %196 = vector.extract_strided_slice %192 {offsets = [0, 0], sizes = [1, 40], strides = [1, 1]} : vector<8x40xf32> to vector<1x40xf32>
    %cst_38 = arith.constant dense<0.000000e+00> : vector<1x40xf32>
    %197 = tpu.matmul %193, %188, %cst_38 {dimension_numbers = #tpu.dot_dimension_numbers<[1], [0], [0], [1], [0, 0, 1, 1], [], []>} : vector<1x10xf32>, vector<10x40xf32>, vector<1x40xf32> -> vector<1x40xf32>
    %198 = arith.addf %196, %197 : vector<1x40xf32>
    %199 = arith.mulf %198, %24 : vector<1x40xf32>
    %200 = math.tanh %199 : vector<1x40xf32>
    %201 = arith.mulf %200, %24 : vector<1x40xf32>
    %202 = arith.addf %201, %27 : vector<1x40xf32>
    %203 = vector.extract_strided_slice %202 {offsets = [0, 0], sizes = [1, 10], strides = [1, 1]} : vector<1x40xf32> to vector<1x10xf32>
    %204 = vector.extract_strided_slice %202 {offsets = [0, 10], sizes = [1, 10], strides = [1, 1]} : vector<1x40xf32> to vector<1x10xf32>
    %205 = vector.extract_strided_slice %202 {offsets = [0, 20], sizes = [1, 10], strides = [1, 1]} : vector<1x40xf32> to vector<1x10xf32>
    %206 = vector.extract_strided_slice %202 {offsets = [0, 30], sizes = [1, 10], strides = [1, 1]} : vector<1x40xf32> to vector<1x10xf32>
    %207 = arith.mulf %204, %194 : vector<1x10xf32>
    %208 = arith.mulf %203, %206 : vector<1x10xf32>
    %209 = arith.addf %207, %208 : vector<1x10xf32>
    %210 = math.tanh %209 : vector<1x10xf32>
    %211 = arith.mulf %205, %210 : vector<1x10xf32>
    %212 = arith.maximumf %195, %211 : vector<1x10xf32>
    %213 = vector.extract_strided_slice %192 {offsets = [1, 0], sizes = [1, 40], strides = [1, 1]} : vector<8x40xf32> to vector<1x40xf32>
    %cst_39 = arith.constant dense<0.000000e+00> : vector<1x40xf32>
    %214 = tpu.matmul %211, %188, %cst_39 {dimension_numbers = #tpu.dot_dimension_numbers<[1], [0], [0], [1], [0, 0, 1, 1], [], []>} : vector<1x10xf32>, vector<10x40xf32>, vector<1x40xf32> -> vector<1x40xf32>
    %215 = arith.addf %213, %214 : vector<1x40xf32>
    %216 = arith.mulf %215, %24 : vector<1x40xf32>
    %217 = math.tanh %216 : vector<1x40xf32>
    %218 = arith.mulf %217, %24 : vector<1x40xf32>
    %219 = arith.addf %218, %27 : vector<1x40xf32>
    %220 = vector.extract_strided_slice %219 {offsets = [0, 0], sizes = [1, 10], strides = [1, 1]} : vector<1x40xf32> to vector<1x10xf32>
    %221 = vector.extract_strided_slice %219 {offsets = [0, 10], sizes = [1, 10], strides = [1, 1]} : vector<1x40xf32> to vector<1x10xf32>
    %222 = vector.extract_strided_slice %219 {offsets = [0, 20], sizes = [1, 10], strides = [1, 1]} : vector<1x40xf32> to vector<1x10xf32>
    %223 = vector.extract_strided_slice %219 {offsets = [0, 30], sizes = [1, 10], strides = [1, 1]} : vector<1x40xf32> to vector<1x10xf32>
    %224 = arith.mulf %221, %209 : vector<1x10xf32>
    %225 = arith.mulf %220, %223 : vector<1x10xf32>
    %226 = arith.addf %224, %225 : vector<1x10xf32>
    %227 = math.tanh %226 : vector<1x10xf32>
    %228 = arith.mulf %222, %227 : vector<1x10xf32>
    %229 = arith.maximumf %212, %228 : vector<1x10xf32>
    %230 = vector.extract_strided_slice %192 {offsets = [2, 0], sizes = [1, 40], strides = [1, 1]} : vector<8x40xf32> to vector<1x40xf32>
    %cst_40 = arith.constant dense<0.000000e+00> : vector<1x40xf32>
    %231 = tpu.matmul %228, %188, %cst_40 {dimension_numbers = #tpu.dot_dimension_numbers<[1], [0], [0], [1], [0, 0, 1, 1], [], []>} : vector<1x10xf32>, vector<10x40xf32>, vector<1x40xf32> -> vector<1x40xf32>
    %232 = arith.addf %230, %231 : vector<1x40xf32>
    %233 = arith.mulf %232, %24 : vector<1x40xf32>
    %234 = math.tanh %233 : vector<1x40xf32>
    %235 = arith.mulf %234, %24 : vector<1x40xf32>
    %236 = arith.addf %235, %27 : vector<1x40xf32>
    %237 = vector.extract_strided_slice %236 {offsets = [0, 0], sizes = [1, 10], strides = [1, 1]} : vector<1x40xf32> to vector<1x10xf32>
    %238 = vector.extract_strided_slice %236 {offsets = [0, 10], sizes = [1, 10], strides = [1, 1]} : vector<1x40xf32> to vector<1x10xf32>
    %239 = vector.extract_strided_slice %236 {offsets = [0, 20], sizes = [1, 10], strides = [1, 1]} : vector<1x40xf32> to vector<1x10xf32>
    %240 = vector.extract_strided_slice %236 {offsets = [0, 30], sizes = [1, 10], strides = [1, 1]} : vector<1x40xf32> to vector<1x10xf32>
    %241 = arith.mulf %238, %226 : vector<1x10xf32>
    %242 = arith.mulf %237, %240 : vector<1x10xf32>
    %243 = arith.addf %241, %242 : vector<1x10xf32>
    %244 = math.tanh %243 : vector<1x10xf32>
    %245 = arith.mulf %239, %244 : vector<1x10xf32>
    %246 = arith.maximumf %229, %245 : vector<1x10xf32>
    %247 = vector.extract_strided_slice %192 {offsets = [3, 0], sizes = [1, 40], strides = [1, 1]} : vector<8x40xf32> to vector<1x40xf32>
    %cst_41 = arith.constant dense<0.000000e+00> : vector<1x40xf32>
    %248 = tpu.matmul %245, %188, %cst_41 {dimension_numbers = #tpu.dot_dimension_numbers<[1], [0], [0], [1], [0, 0, 1, 1], [], []>} : vector<1x10xf32>, vector<10x40xf32>, vector<1x40xf32> -> vector<1x40xf32>
    %249 = arith.addf %247, %248 : vector<1x40xf32>
    %250 = arith.mulf %249, %24 : vector<1x40xf32>
    %251 = math.tanh %250 : vector<1x40xf32>
    %252 = arith.mulf %251, %24 : vector<1x40xf32>
    %253 = arith.addf %252, %27 : vector<1x40xf32>
    %254 = vector.extract_strided_slice %253 {offsets = [0, 0], sizes = [1, 10], strides = [1, 1]} : vector<1x40xf32> to vector<1x10xf32>
    %255 = vector.extract_strided_slice %253 {offsets = [0, 10], sizes = [1, 10], strides = [1, 1]} : vector<1x40xf32> to vector<1x10xf32>
    %256 = vector.extract_strided_slice %253 {offsets = [0, 20], sizes = [1, 10], strides = [1, 1]} : vector<1x40xf32> to vector<1x10xf32>
    %257 = vector.extract_strided_slice %253 {offsets = [0, 30], sizes = [1, 10], strides = [1, 1]} : vector<1x40xf32> to vector<1x10xf32>
    %258 = arith.mulf %255, %243 : vector<1x10xf32>
    %259 = arith.mulf %254, %257 : vector<1x10xf32>
    %260 = arith.addf %258, %259 : vector<1x10xf32>
    %261 = math.tanh %260 : vector<1x10xf32>
    %262 = arith.mulf %256, %261 : vector<1x10xf32>
    %263 = arith.maximumf %246, %262 : vector<1x10xf32>
    %264 = vector.extract_strided_slice %192 {offsets = [4, 0], sizes = [1, 40], strides = [1, 1]} : vector<8x40xf32> to vector<1x40xf32>
    %cst_42 = arith.constant dense<0.000000e+00> : vector<1x40xf32>
    %265 = tpu.matmul %262, %188, %cst_42 {dimension_numbers = #tpu.dot_dimension_numbers<[1], [0], [0], [1], [0, 0, 1, 1], [], []>} : vector<1x10xf32>, vector<10x40xf32>, vector<1x40xf32> -> vector<1x40xf32>
    %266 = arith.addf %264, %265 : vector<1x40xf32>
    %267 = arith.mulf %266, %24 : vector<1x40xf32>
    %268 = math.tanh %267 : vector<1x40xf32>
    %269 = arith.mulf %268, %24 : vector<1x40xf32>
    %270 = arith.addf %269, %27 : vector<1x40xf32>
    %271 = vector.extract_strided_slice %270 {offsets = [0, 0], sizes = [1, 10], strides = [1, 1]} : vector<1x40xf32> to vector<1x10xf32>
    %272 = vector.extract_strided_slice %270 {offsets = [0, 10], sizes = [1, 10], strides = [1, 1]} : vector<1x40xf32> to vector<1x10xf32>
    %273 = vector.extract_strided_slice %270 {offsets = [0, 20], sizes = [1, 10], strides = [1, 1]} : vector<1x40xf32> to vector<1x10xf32>
    %274 = vector.extract_strided_slice %270 {offsets = [0, 30], sizes = [1, 10], strides = [1, 1]} : vector<1x40xf32> to vector<1x10xf32>
    %275 = arith.mulf %272, %260 : vector<1x10xf32>
    %276 = arith.mulf %271, %274 : vector<1x10xf32>
    %277 = arith.addf %275, %276 : vector<1x10xf32>
    %278 = math.tanh %277 : vector<1x10xf32>
    %279 = arith.mulf %273, %278 : vector<1x10xf32>
    %280 = arith.maximumf %263, %279 : vector<1x10xf32>
    %281 = vector.extract_strided_slice %192 {offsets = [5, 0], sizes = [1, 40], strides = [1, 1]} : vector<8x40xf32> to vector<1x40xf32>
    %cst_43 = arith.constant dense<0.000000e+00> : vector<1x40xf32>
    %282 = tpu.matmul %279, %188, %cst_43 {dimension_numbers = #tpu.dot_dimension_numbers<[1], [0], [0], [1], [0, 0, 1, 1], [], []>} : vector<1x10xf32>, vector<10x40xf32>, vector<1x40xf32> -> vector<1x40xf32>
    %283 = arith.addf %281, %282 : vector<1x40xf32>
    %284 = arith.mulf %283, %24 : vector<1x40xf32>
    %285 = math.tanh %284 : vector<1x40xf32>
    %286 = arith.mulf %285, %24 : vector<1x40xf32>
    %287 = arith.addf %286, %27 : vector<1x40xf32>
    %288 = vector.extract_strided_slice %287 {offsets = [0, 0], sizes = [1, 10], strides = [1, 1]} : vector<1x40xf32> to vector<1x10xf32>
    %289 = vector.extract_strided_slice %287 {offsets = [0, 10], sizes = [1, 10], strides = [1, 1]} : vector<1x40xf32> to vector<1x10xf32>
    %290 = vector.extract_strided_slice %287 {offsets = [0, 20], sizes = [1, 10], strides = [1, 1]} : vector<1x40xf32> to vector<1x10xf32>
    %291 = vector.extract_strided_slice %287 {offsets = [0, 30], sizes = [1, 10], strides = [1, 1]} : vector<1x40xf32> to vector<1x10xf32>
    %292 = arith.mulf %289, %277 : vector<1x10xf32>
    %293 = arith.mulf %288, %291 : vector<1x10xf32>
    %294 = arith.addf %292, %293 : vector<1x10xf32>
    %295 = math.tanh %294 : vector<1x10xf32>
    %296 = arith.mulf %290, %295 : vector<1x10xf32>
    %297 = arith.maximumf %280, %296 : vector<1x10xf32>
    %298 = vector.extract_strided_slice %192 {offsets = [6, 0], sizes = [1, 40], strides = [1, 1]} : vector<8x40xf32> to vector<1x40xf32>
    %cst_44 = arith.constant dense<0.000000e+00> : vector<1x40xf32>
    %299 = tpu.matmul %296, %188, %cst_44 {dimension_numbers = #tpu.dot_dimension_numbers<[1], [0], [0], [1], [0, 0, 1, 1], [], []>} : vector<1x10xf32>, vector<10x40xf32>, vector<1x40xf32> -> vector<1x40xf32>
    %300 = arith.addf %298, %299 : vector<1x40xf32>
    %301 = arith.mulf %300, %24 : vector<1x40xf32>
    %302 = math.tanh %301 : vector<1x40xf32>
    %303 = arith.mulf %302, %24 : vector<1x40xf32>
    %304 = arith.addf %303, %27 : vector<1x40xf32>
    %305 = vector.extract_strided_slice %304 {offsets = [0, 0], sizes = [1, 10], strides = [1, 1]} : vector<1x40xf32> to vector<1x10xf32>
    %306 = vector.extract_strided_slice %304 {offsets = [0, 10], sizes = [1, 10], strides = [1, 1]} : vector<1x40xf32> to vector<1x10xf32>
    %307 = vector.extract_strided_slice %304 {offsets = [0, 20], sizes = [1, 10], strides = [1, 1]} : vector<1x40xf32> to vector<1x10xf32>
    %308 = vector.extract_strided_slice %304 {offsets = [0, 30], sizes = [1, 10], strides = [1, 1]} : vector<1x40xf32> to vector<1x10xf32>
    %309 = arith.mulf %306, %294 : vector<1x10xf32>
    %310 = arith.mulf %305, %308 : vector<1x10xf32>
    %311 = arith.addf %309, %310 : vector<1x10xf32>
    %312 = math.tanh %311 : vector<1x10xf32>
    %313 = arith.mulf %307, %312 : vector<1x10xf32>
    %314 = arith.maximumf %297, %313 : vector<1x10xf32>
    %315 = vector.extract_strided_slice %192 {offsets = [7, 0], sizes = [1, 40], strides = [1, 1]} : vector<8x40xf32> to vector<1x40xf32>
    %cst_45 = arith.constant dense<0.000000e+00> : vector<1x40xf32>
    %316 = tpu.matmul %313, %188, %cst_45 {dimension_numbers = #tpu.dot_dimension_numbers<[1], [0], [0], [1], [0, 0, 1, 1], [], []>} : vector<1x10xf32>, vector<10x40xf32>, vector<1x40xf32> -> vector<1x40xf32>
    %317 = arith.addf %315, %316 : vector<1x40xf32>
    %318 = arith.mulf %317, %24 : vector<1x40xf32>
    %319 = math.tanh %318 : vector<1x40xf32>
    %320 = arith.mulf %319, %24 : vector<1x40xf32>
    %321 = arith.addf %320, %27 : vector<1x40xf32>
    %322 = vector.extract_strided_slice %321 {offsets = [0, 0], sizes = [1, 10], strides = [1, 1]} : vector<1x40xf32> to vector<1x10xf32>
    %323 = vector.extract_strided_slice %321 {offsets = [0, 10], sizes = [1, 10], strides = [1, 1]} : vector<1x40xf32> to vector<1x10xf32>
    %324 = vector.extract_strided_slice %321 {offsets = [0, 20], sizes = [1, 10], strides = [1, 1]} : vector<1x40xf32> to vector<1x10xf32>
    %325 = vector.extract_strided_slice %321 {offsets = [0, 30], sizes = [1, 10], strides = [1, 1]} : vector<1x40xf32> to vector<1x10xf32>
    %326 = arith.mulf %323, %311 : vector<1x10xf32>
    %327 = arith.mulf %322, %325 : vector<1x10xf32>
    %328 = arith.addf %326, %327 : vector<1x10xf32>
    %329 = math.tanh %328 : vector<1x10xf32>
    %330 = arith.mulf %324, %329 : vector<1x10xf32>
    %331 = arith.maximumf %314, %330 : vector<1x10xf32>
    %c0_46 = arith.constant 0 : index
    %c0_47 = arith.constant 0 : index
    %332 = vector.load %arg7[%c0_46, %c0_47] : memref<10x1xf32, #tpu.memory_space<vmem>>, vector<10x1xf32>
    %cst_48 = arith.constant dense<0.000000e+00> : vector<1x1xf32>
    %333 = tpu.matmul %331, %332, %cst_48 {dimension_numbers = #tpu.dot_dimension_numbers<[1], [0], [0], [1], [0, 0, 1, 1], [], []>} : vector<1x10xf32>, vector<10x1xf32>, vector<1x1xf32> -> vector<1x1xf32>
    %c0_49 = arith.constant 0 : index
    %c0_50 = arith.constant 0 : index
    %334 = vector.load %arg8[%c0_49, %c0_50] : memref<1x1xf32, #tpu.memory_space<vmem>>, vector<1x1xf32>
    %335 = arith.addf %333, %334 : vector<1x1xf32>
    %336 = arith.negf %335 : vector<1x1xf32>
    %337 = math.exp %336 : vector<1x1xf32>
    %cst_51 = arith.constant 1.000000e+00 : f32
    %338 = vector.broadcast %cst_51 : f32 to vector<1x1xf32>
    %339 = arith.addf %338, %337 : vector<1x1xf32>
    %340 = arith.divf %338, %339 : vector<1x1xf32>
    %c0_52 = arith.constant 0 : index
    %c0_53 = arith.constant 0 : index
    %341 = vector.load %arg9[%c0_52, %c0_53] : memref<1x1xf32, #tpu.memory_space<vmem>>, vector<1x1xf32>
    tpu.vector_store %arg9[%c0_52, %c0_53], %340 {strides = array<i32>} : memref<1x1xf32, #tpu.memory_space<vmem>>, vector<1x1xf32>,
    return
  }
}

</mosaic_0001>

<llo_original>
// kernel: mynn_forward_packed.1
$region0: #{mynn_forward_packed.1}
  #allocation0 [shape = 'u32[]', space=smem, size = 0x4, offset = 0x4, fixed_abs, tag = 'smem constant byte address 0x4 - core index']
  #allocation1 [shape = 'u32[72,128]{1,0:T(1,128)}', space=vmem, size = 0x9000, scoped, tag = 'internal scratch']
  #allocation2 [shape = 'f32[1,1]{1,0:T(1,128)S(1)}', space=vmem, size = 0x200, scoped, tag = 'scoped memory for mynn_forward_packed.1']
  %s0 = inlined_call_operand.vmem [shape: f32[8,300], index: 0, kind: input, shape index: {}]
  %s1 = inlined_call_operand.vmem [shape: f32[300,40], index: 1, kind: input, shape index: {}]
  %s2 = inlined_call_operand.vmem [shape: f32[1,40], index: 2, kind: input, shape index: {}]
  %s3 = inlined_call_operand.vmem [shape: f32[10,40], index: 3, kind: input, shape index: {}]
  %s4 = inlined_call_operand.vmem [shape: f32[10,40], index: 4, kind: input, shape index: {}]
  %s5 = inlined_call_operand.vmem [shape: f32[1,40], index: 5, kind: input, shape index: {}]
  %s6 = inlined_call_operand.vmem [shape: f32[10,40], index: 6, kind: input, shape index: {}]
  %s7 = inlined_call_operand.vmem [shape: f32[10,1], index: 7, kind: input, shape index: {}]
  %s8 = inlined_call_operand.<no memory space> [shape: f32[1,1], index: 8, kind: input, shape index: {}]
  %s9 = inlined_call_operand.hbm [shape: f32[1,1], index: 9, kind: output, shape index: {}]
  %s10 = sld [smem:[#allocation0]]
  $region46: #{mynn_forward_packed.1} parent=0
    _
  %s12 = ssub.s32 1, %s10
  %s13 = scalar_select 0, %s12, %s10
  %v14 = vstv %s8
  %15 = vst [vmem:[#allocation2] sm:$0x1] %v14
  $region1: #{mynn_forward_packed.1} parent=0
    #allocation3 [shape = 'u8[512]{0}', space=vmem, size = 0x400, scoped, tag = 'output window, operand 0, single buffered']
    #allocation4 [shape = 's32[1]{0}', space=sflag, size = 0x4, scoped, tag = 'scoped memory for mynn_forward_packed.1']
    %16 = vsyncpa [#allocation4], 0
    // Predicated region
    $region2: #{mynn_forward_packed.1} parent=1 // pred_check
      _
    $region3: #{mynn_forward_packed.1} parent=1 // pred_check_branch
      %18 = sbr.rel (0) target = $region5
    $region4: #{mynn_forward_packed.1} parent=1 // pred_region
      _
    $region5: #{mynn_forward_packed.1} parent=1 // pred_fallthru
      _
    // Predicated region
    $region6: #{mynn_forward_packed.1} parent=1 // pred_check
      _
    $region7: #{mynn_forward_packed.1} parent=1 // pred_check_branch
      %20 = sbr.rel (0) target = $region9
    $region8: #{mynn_forward_packed.1} parent=1 // pred_region
      _
    $region9: #{mynn_forward_packed.1} parent=1 // pred_fallthru
      _
    // Predicated region
    $region10: #{mynn_forward_packed.1} parent=1 // pred_check
      _
    $region11: #{mynn_forward_packed.1} parent=1 // pred_check_branch
      %22 = sbr.rel (0) target = $region13
    $region12: #{mynn_forward_packed.1} parent=1 // pred_region
      _
    $region13: #{mynn_forward_packed.1} parent=1 // pred_fallthru
      _
    // Predicated region
    $region14: #{mynn_forward_packed.1} parent=1 // pred_check
      _
    $region15: #{mynn_forward_packed.1} parent=1 // pred_check_branch
      %24 = sbr.rel (0) target = $region17
    $region16: #{mynn_forward_packed.1} parent=1 // pred_region
      _
    $region17: #{mynn_forward_packed.1} parent=1 // pred_fallthru
      _
    // Predicated region
    $region18: #{mynn_forward_packed.1} parent=1 // pred_check
      _
    $region19: #{mynn_forward_packed.1} parent=1 // pred_check_branch
      %26 = sbr.rel (0) target = $region21
    $region20: #{mynn_forward_packed.1} parent=1 // pred_region
      _
    $region21: #{mynn_forward_packed.1} parent=1 // pred_fallthru
      _
    // Predicated region
    $region22: #{mynn_forward_packed.1} parent=1 // pred_check
      _
    $region23: #{mynn_forward_packed.1} parent=1 // pred_check_branch
      %28 = sbr.rel (0) target = $region25
    $region24: #{mynn_forward_packed.1} parent=1 // pred_region
      _
    $region25: #{mynn_forward_packed.1} parent=1 // pred_fallthru
      _
    // Predicated region
    $region26: #{mynn_forward_packed.1} parent=1 // pred_check
      _
    $region27: #{mynn_forward_packed.1} parent=1 // pred_check_branch
      %30 = sbr.rel (0) target = $region29
    $region28: #{mynn_forward_packed.1} parent=1 // pred_region
      _
    $region29: #{mynn_forward_packed.1} parent=1 // pred_fallthru
      _
    // Predicated region
    $region30: #{mynn_forward_packed.1} parent=1 // pred_check
      _
    $region31: #{mynn_forward_packed.1} parent=1 // pred_check_branch
      %32 = sbr.rel (0) target = $region33
    $region32: #{mynn_forward_packed.1} parent=1 // pred_region
      _
    $region33: #{mynn_forward_packed.1} parent=1 // pred_fallthru
      _
    // Predicated region
    $region34: #{mynn_forward_packed.1} parent=1 // pred_check
      _
    $region35: #{mynn_forward_packed.1} parent=1 // pred_check_branch
      %34 = sbr.rel (0) target = $region37
    $region36: #{mynn_forward_packed.1} parent=1 // pred_region
      _
    $region37: #{mynn_forward_packed.1} parent=1 // pred_fallthru
      _
    %v35 = vld [vmem:[%s0] sm:$0xff]
    %v36 = vld [vmem:[%s0 + $0x8] sm:$0xff]
    %v37 = vld [vmem:[%s0 + $0x10] sm:$0xff]
    %v38 = vlaneseq
    %v39 = vand.u32 %v38, 127
    %vm40 = vcmp.lt.s32.totalorder %v39, 0
    %v41 = vsub.s32 0, %v39
    %v42 = vsel %vm40, %v41, %v39
    %v43 = vand.u32 %v42, 65535
    %v44 = vshrl.u32 %v42, 16
    %v46 = vmul.u32 %v43, 52429
    %v47 = vmul.u32 %v43, 52428
    %v48 = vmul.u32 %v44, 52429
    %v49 = vmul.u32 %v44, 52428
    %v50 = vshll.u32 %v47, 16
    %v51 = vshrl.u32 %v47, 16
    %v52 = vshll.u32 %v48, 16
    %v53 = vshrl.u32 %v48, 16
    %vm54 = vc.u32 %v46, %v50
    %v55 = vsel %vm54, 1, 0
    %v56 = vadd.s32 %v46, %v50
    %v57 = vadd.s32 %v49, %v55
    %vm58 = vc.u32 %v56, %v52
    %v59 = vsel %vm58, 1, 0
    %v60 = vadd.s32 %v56, %v52
    %v61 = vadd.s32 %v57, %v59
    %v62 = vadd.s32 %v61, %v51
    %v63 = vadd.s32 %v62, %v53
    %v64 = vshrl.u32 %v63, 3
    %v65 = vmul.u32 %v64, 10
    %v66 = vsub.s32 %v42, %v65
    %v67 = vsub.s32 0, %v66
    %v68 = vsel %vm40, %v67, %v66
    %vm69 = vcmp.ne.s32.totalorder %v68, 0
    %vm70 = vcmp.lt.s32.totalorder %v68, 0
    %vm71 = vmand %vm70, %vm69
    %v72 = vadd.s32 %v68, 10
    %v73 = vsel %vm71, %v72, %v68
    %vm74 = vcmp.ge.s32.totalorder %v73, 5
    %vm75 = vcmp.ge.s32.totalorder %v39, 30
    %v76 = vsel %vm75, 1.0, 0.5
    %v77 = vsel %vm75, 0.0, 0.5
    %vm78 = vcmp.ge.s32.totalorder %v39, 5
    %v79 = vlaneseq
    %v80 = vshrl.u32 %v79, 7
    %v81 = vadd.s32 %v80, %v39
    %vm82 = vcmp.eq.s32.totalorder %v81, 7
    %v83 = vsel %vm82, 1, 0
    %v84 = vcvt.s32.f32 %v83
    %v85 = vld [vmem:[%s1] sm:$0xff]
    %v86 = vld [vmem:[%s1 + $0x8] sm:$0xff]
    %v87 = vld [vmem:[%s1 + $0x10] sm:$0xff]
    %v88 = vld [vmem:[%s1 + $0x18] sm:$0xff]
    %v89 = vld [vmem:[%s1 + $0x20] sm:$0xff]
    %v90 = vld [vmem:[%s1 + $0x28] sm:$0xff]
    %v91 = vld [vmem:[%s1 + $0x30] sm:$0xff]
    %v92 = vld [vmem:[%s1 + $0x38] sm:$0xff]
    %v93 = vld [vmem:[%s1 + $0x40] sm:$0xff]
    %v94 = vld [vmem:[%s1 + $0x48] sm:$0xff]
    %v95 = vld [vmem:[%s1 + $0x50] sm:$0xff]
    %v96 = vld [vmem:[%s1 + $0x58] sm:$0xff]
    %v97 = vld [vmem:[%s1 + $0x60] sm:$0xff]
    %v98 = vld [vmem:[%s1 + $0x68] sm:$0xff]
    %v99 = vld [vmem:[%s1 + $0x70] sm:$0xff]
    %v100 = vld [vmem:[%s1 + $0x78] sm:$0xff]
    %v101 = vld [vmem:[%s1 + $0x80] sm:$0xff]
    %v102 = vld [vmem:[%s1 + $0x88] sm:$0xff]
    %v103 = vld [vmem:[%s1 + $0x90] sm:$0xff]
    %v104 = vld [vmem:[%s1 + $0x98] sm:$0xff]
    %v105 = vld [vmem:[%s1 + $0xa0] sm:$0xff]
    %v106 = vld [vmem:[%s1 + $0xa8] sm:$0xff]
    %v107 = vld [vmem:[%s1 + $0xb0] sm:$0xff]
    %v108 = vld [vmem:[%s1 + $0xb8] sm:$0xff]
    %v109 = vld [vmem:[%s1 + $0xc0] sm:$0xff]
    %v110 = vld [vmem:[%s1 + $0xc8] sm:$0xff]
    %v111 = vld [vmem:[%s1 + $0xd0] sm:$0xff]
    %v112 = vld [vmem:[%s1 + $0xd8] sm:$0xff]
    %v113 = vld [vmem:[%s1 + $0xe0] sm:$0xff]
    %v114 = vld [vmem:[%s1 + $0xe8] sm:$0xff]
    %v115 = vld [vmem:[%s1 + $0xf0] sm:$0xff]
    %v116 = vld [vmem:[%s1 + $0xf8] sm:$0xff]
    %v117 = vld [vmem:[%s1 + $0x100] sm:$0xff]
    %v118 = vld [vmem:[%s1 + $0x108] sm:$0xff]
    %v119 = vld [vmem:[%s1 + $0x110] sm:$0xff]
    %v120 = vld [vmem:[%s1 + $0x118] sm:$0xff]
    %v121 = vld [vmem:[%s1 + $0x120] sm:$0xff]
    %v122 = vld [vmem:[%s1 + $0x128] sm:$0xf]
    %v123 = vld [vmem:[%s2] sm:$0x1]
    %v125 = vperm.slane %v123, 0
    %vm127 = vcmask 359424
    %v129 = vsel %vm127, %v37, 0
    %vm131 = vcmask 1043456
    %v133 = vsel %vm131, %v122, 0
    %135 = vmatpush.msra.mxu0 %v100
    %136 = vmatpush.msra.mxu0 %v99
    %137 = vmatpush.msra.mxu0 %v98
    %138 = vmatpush.msra.mxu0 %v97
    %139 = vmatpush.msra.mxu0 %v96
    %140 = vmatpush.msra.mxu0 %v95
    %141 = vmatpush.msra.mxu0 %v94
    %142 = vmatpush.msra.mxu0 %v93
    %143 = vmatpush.msra.mxu0 %v92
    %144 = vmatpush.msra.mxu0 %v91
    %145 = vmatpush.msra.mxu0 %v90
    %146 = vmatpush.msra.mxu0 %v89
    %147 = vmatpush.msra.mxu0 %v88
    %148 = vmatpush.msra.mxu0 %v87
    %149 = vmatpush.msra.mxu0 %v86
    %150 = vmatpush.msra.mxu0 %v85
    %151 = vmatmul.f32.gmra.mxu0 %v35
    %v152 = vpop.f32.mrf.mxu0
    %v153 = vadd.f32 %v125, %v152
    %154 = vdwg.mxu0
    %155 = vmatpush.msra.mxu0 %v116
    %156 = vmatpush.msra.mxu0 %v115
    %157 = vmatpush.msra.mxu0 %v114
    %158 = vmatpush.msra.mxu0 %v113
    %159 = vmatpush.msra.mxu0 %v112
    %160 = vmatpush.msra.mxu0 %v111
    %161 = vmatpush.msra.mxu0 %v110
    %162 = vmatpush.msra.mxu0 %v109
    %163 = vmatpush.msra.mxu0 %v108
    %164 = vmatpush.msra.mxu0 %v107
    %165 = vmatpush.msra.mxu0 %v106
    %166 = vmatpush.msra.mxu0 %v105
    %167 = vmatpush.msra.mxu0 %v104
    %168 = vmatpush.msra.mxu0 %v103
    %169 = vmatpush.msra.mxu0 %v102
    %170 = vmatpush.msra.mxu0 %v101
    %171 = vmatmul.f32.gmra.mxu0 %v36
    %v172 = vpop.f32.mrf.mxu0
    %v173 = vadd.f32 %v153, %v172
    %174 = vdwg.mxu0
    %175 = vmatpush.msra.mxu0 0.0
    %176 = vmatpush.msra.mxu0 0.0
    %177 = vmatpush.msra.mxu0 0.0
    %178 = vmatpush.msra.mxu0 0.0
    %179 = vmatpush.msra.mxu0 0.0
    %180 = vmatpush.msra.mxu0 0.0
    %181 = vmatpush.msra.mxu0 0.0
    %182 = vmatpush.msra.mxu0 0.0
    %183 = vmatpush.msra.mxu0 0.0
    %184 = vmatpush.msra.mxu0 0.0
    %185 = vmatpush.msra.mxu0 %v133
    %186 = vmatpush.msra.mxu0 %v121
    %187 = vmatpush.msra.mxu0 %v120
    %188 = vmatpush.msra.mxu0 %v119
    %189 = vmatpush.msra.mxu0 %v118
    %190 = vmatpush.msra.mxu0 %v117
    %191 = vmatmul.f32.gmra.mxu0 %v129
    %v192 = vpop.f32.mrf.mxu0
    %v193 = vadd.f32 %v173, %v192
    %194 = vdwg.mxu0
    %v195 = vld [vmem:[%s3] sm:$0xff]
    %v196 = vld [vmem:[%s3 + $0x8] sm:$0x3]
    %vm197 = vcmask 64512
    %v199 = vsel %vm197, %v84, 0
    %201 = vmatpush.msra.mxu0 0.0
    %202 = vmatpush.msra.mxu0 0.0
    %203 = vmatpush.msra.mxu0 0.0
    %204 = vmatpush.msra.mxu0 0.0
    %205 = vmatpush.msra.mxu0 0.0
    %206 = vmatpush.msra.mxu0 0.0
    %207 = vmatpush.msra.mxu0 0.0
    %208 = vmatpush.msra.mxu0 0.0
    %209 = vmatpush.msra.mxu0 0.0
    %210 = vmatpush.msra.mxu0 0.0
    %211 = vmatpush.msra.mxu0 0.0
    %212 = vmatpush.msra.mxu0 0.0
    %213 = vmatpush.msra.mxu0 0.0
    %214 = vmatpush.msra.mxu0 0.0
    %215 = vmatpush.msra.mxu0 0.0
    %216 = vmatpush.msra.mxu0 %v193
    %217 = vmatmul.f32.gmra.mxu0 %v199
    %v218 = vpop.f32.mrf.mxu0
    %v219 = vadd.f32 0.0, %v218
    %220 = vdwg.mxu0
    %v221 = vsel %vm74, 1, 0
    %vm222 = vcmp.eq.s32.totalorder %v221, 1
    %v223 = vsel %vm222, %v219, %v193
    %vm224 = vcmask 80896
    %v226 = vsel %vm224, 0.0, 0
    %vm228 = vcmask 1041408
    %v230 = vsel %vm228, %v196, 0
    %232 = vmatpush.msra.mxu0 0.0
    %233 = vmatpush.msra.mxu0 0.0
    %234 = vmatpush.msra.mxu0 0.0
    %235 = vmatpush.msra.mxu0 0.0
    %236 = vmatpush.msra.mxu0 0.0
    %237 = vmatpush.msra.mxu0 0.0
    %238 = vmatpush.msra.mxu0 0.0
    %239 = vmatpush.msra.mxu0 0.0
    %240 = vmatpush.msra.mxu0 0.0
    %241 = vmatpush.msra.mxu0 0.0
    %242 = vmatpush.msra.mxu0 0.0
    %243 = vmatpush.msra.mxu0 0.0
    %244 = vmatpush.msra.mxu0 0.0
    %245 = vmatpush.msra.mxu0 0.0
    %246 = vmatpush.msra.mxu0 %v230
    %247 = vmatpush.msra.mxu0 %v195
    %248 = vmatmul.f32.gmra.mxu0 %v226
    %v249 = vpop.f32.mrf.mxu0
    %v250 = vadd.f32 0.0, %v249
    %251 = vdwg.mxu0
    %v252 = vadd.f32 %v223, %v250
    %v253 = vmul.f32 %v252, %v76
    %v254 = vtanh.pop %v253
    %v255 = vmul.f32 %v254, %v76
    %v256 = vadd.f32 %v255, %v77
    %v257 = vmul.f32 %v256, 0.0
    %259 = vrot.lane.b32.xlu0 %v256, 98
    %v260 = vpop.permute.xlu0 %259
    %v262 = vmul.f32 %v256, %v260
    %264 = vrot.lane.b32.xlu0 %v262, 10
    %v265 = vpop.permute.xlu0 %264
    %v267 = vadd.f32 %v257, %v265
    %v268 = vtanh.pop %v267
    %270 = vrot.lane.b32.xlu0 %v268, 10
    %v271 = vpop.permute.xlu0 %270
    %v273 = vmul.f32 %v256, %v271
    %275 = vrot.lane.b32.xlu0 %v273, 108
    %v276 = vpop.permute.xlu0 %275
    %v277 = vsel %vm224, %v276, 0
    %279 = vmatpush.msra.mxu0 0.0
    %280 = vmatpush.msra.mxu0 0.0
    %281 = vmatpush.msra.mxu0 0.0
    %282 = vmatpush.msra.mxu0 0.0
    %283 = vmatpush.msra.mxu0 0.0
    %284 = vmatpush.msra.mxu0 0.0
    %285 = vmatpush.msra.mxu0 0.0
    %286 = vmatpush.msra.mxu0 0.0
    %287 = vmatpush.msra.mxu0 0.0
    %288 = vmatpush.msra.mxu0 0.0
    %289 = vmatpush.msra.mxu0 0.0
    %290 = vmatpush.msra.mxu0 0.0
    %291 = vmatpush.msra.mxu0 0.0
    %292 = vmatpush.msra.mxu0 0.0
    %293 = vmatpush.msra.mxu0 %v230
    %294 = vmatpush.msra.mxu0 %v195
    %295 = vmatmul.f32.gmra.mxu0 %v277
    %v296 = vpop.f32.mrf.mxu0
    %v297 = vadd.f32 0.0, %v296
    %298 = vdwg.mxu0
    %v300 = vrot.slane %v297, 7
    %v302 = vadd.f32 %v223, %v300
    %v303 = vmul.f32 %v302, %v76
    %v304 = vtanh.pop %v303
    %v305 = vmul.f32 %v304, %v76
    %v306 = vadd.f32 %v305, %v77
    %v308 = vrot.slane %v267, 7
    %v310 = vmul.f32 %v306, %v308
    %312 = vrot.lane.b32.xlu0 %v306, 98
    %v313 = vpop.permute.xlu0 %312
    %v315 = vmul.f32 %v306, %v313
    %317 = vrot.lane.b32.xlu0 %v315, 10
    %v318 = vpop.permute.xlu0 %317
    %v320 = vadd.f32 %v310, %v318
    %v321 = vtanh.pop %v320
    %323 = vrot.lane.b32.xlu0 %v321, 10
    %v324 = vpop.permute.xlu0 %323
    %v326 = vmul.f32 %v306, %v324
    %v328 = vrot.slane %v326, 1
    %329 = vrot.lane.b32.xlu0 %v328, 108
    %v330 = vpop.permute.xlu0 %329
    %v331 = vsel %vm224, %v330, 0
    %333 = vmatpush.msra.mxu0 0.0
    %334 = vmatpush.msra.mxu0 0.0
    %335 = vmatpush.msra.mxu0 0.0
    %336 = vmatpush.msra.mxu0 0.0
    %337 = vmatpush.msra.mxu0 0.0
    %338 = vmatpush.msra.mxu0 0.0
    %339 = vmatpush.msra.mxu0 0.0
    %340 = vmatpush.msra.mxu0 0.0
    %341 = vmatpush.msra.mxu0 0.0
    %342 = vmatpush.msra.mxu0 0.0
    %343 = vmatpush.msra.mxu0 0.0
    %344 = vmatpush.msra.mxu0 0.0
    %345 = vmatpush.msra.mxu0 0.0
    %346 = vmatpush.msra.mxu0 0.0
    %347 = vmatpush.msra.mxu0 %v230
    %348 = vmatpush.msra.mxu0 %v195
    %349 = vmatmul.f32.gmra.mxu0 %v331
    %v350 = vpop.f32.mrf.mxu0
    %v351 = vadd.f32 0.0, %v350
    %352 = vdwg.mxu0
    %v354 = vrot.slane %v351, 6
    %v356 = vadd.f32 %v223, %v354
    %v357 = vmul.f32 %v356, %v76
    %v358 = vtanh.pop %v357
    %v359 = vmul.f32 %v358, %v76
    %v360 = vadd.f32 %v359, %v77
    %v362 = vrot.slane %v320, 7
    %v364 = vmul.f32 %v360, %v362
    %366 = vrot.lane.b32.xlu0 %v360, 98
    %v367 = vpop.permute.xlu0 %366
    %v369 = vmul.f32 %v360, %v367
    %371 = vrot.lane.b32.xlu0 %v369, 10
    %v372 = vpop.permute.xlu0 %371
    %v374 = vadd.f32 %v364, %v372
    %v375 = vtanh.pop %v374
    %377 = vrot.lane.b32.xlu0 %v375, 10
    %v378 = vpop.permute.xlu0 %377
    %v380 = vmul.f32 %v360, %v378
    %v382 = vrot.slane %v380, 2
    %383 = vrot.lane.b32.xlu0 %v382, 108
    %v384 = vpop.permute.xlu0 %383
    %v385 = vsel %vm224, %v384, 0
    %387 = vmatpush.msra.mxu0 0.0
    %388 = vmatpush.msra.mxu0 0.0
    %389 = vmatpush.msra.mxu0 0.0
    %390 = vmatpush.msra.mxu0 0.0
    %391 = vmatpush.msra.mxu0 0.0
    %392 = vmatpush.msra.mxu0 0.0
    %393 = vmatpush.msra.mxu0 0.0
    %394 = vmatpush.msra.mxu0 0.0
    %395 = vmatpush.msra.mxu0 0.0
    %396 = vmatpush.msra.mxu0 0.0
    %397 = vmatpush.msra.mxu0 0.0
    %398 = vmatpush.msra.mxu0 0.0
    %399 = vmatpush.msra.mxu0 0.0
    %400 = vmatpush.msra.mxu0 0.0
    %401 = vmatpush.msra.mxu0 %v230
    %402 = vmatpush.msra.mxu0 %v195
    %403 = vmatmul.f32.gmra.mxu0 %v385
    %v404 = vpop.f32.mrf.mxu0
    %v405 = vadd.f32 0.0, %v404
    %406 = vdwg.mxu0
    %v408 = vrot.slane %v405, 5
    %v410 = vadd.f32 %v223, %v408
    %v411 = vmul.f32 %v410, %v76
    %v412 = vtanh.pop %v411
    %v413 = vmul.f32 %v412, %v76
    %v414 = vadd.f32 %v413, %v77
    %v416 = vrot.slane %v374, 7
    %v418 = vmul.f32 %v414, %v416
    %420 = vrot.lane.b32.xlu0 %v414, 98
    %v421 = vpop.permute.xlu0 %420
    %v423 = vmul.f32 %v414, %v421
    %425 = vrot.lane.b32.xlu0 %v423, 10
    %v426 = vpop.permute.xlu0 %425
    %v428 = vadd.f32 %v418, %v426
    %v429 = vtanh.pop %v428
    %431 = vrot.lane.b32.xlu0 %v429, 10
    %v432 = vpop.permute.xlu0 %431
    %v434 = vmul.f32 %v414, %v432
    %v436 = vrot.slane %v434, 3
    %437 = vrot.lane.b32.xlu0 %v436, 108
    %v438 = vpop.permute.xlu0 %437
    %v439 = vsel %vm224, %v438, 0
    %441 = vmatpush.msra.mxu0 0.0
    %442 = vmatpush.msra.mxu0 0.0
    %443 = vmatpush.msra.mxu0 0.0
    %444 = vmatpush.msra.mxu0 0.0
    %445 = vmatpush.msra.mxu0 0.0
    %446 = vmatpush.msra.mxu0 0.0
    %447 = vmatpush.msra.mxu0 0.0
    %448 = vmatpush.msra.mxu0 0.0
    %449 = vmatpush.msra.mxu0 0.0
    %450 = vmatpush.msra.mxu0 0.0
    %451 = vmatpush.msra.mxu0 0.0
    %452 = vmatpush.msra.mxu0 0.0
    %453 = vmatpush.msra.mxu0 0.0
    %454 = vmatpush.msra.mxu0 0.0
    %455 = vmatpush.msra.mxu0 %v230
    %456 = vmatpush.msra.mxu0 %v195
    %457 = vmatmul.f32.gmra.mxu0 %v439
    %v458 = vpop.f32.mrf.mxu0
    %v459 = vadd.f32 0.0, %v458
    %460 = vdwg.mxu0
    %v462 = vrot.slane %v459, 4
    %v464 = vadd.f32 %v223, %v462
    %v465 = vmul.f32 %v464, %v76
    %v466 = vtanh.pop %v465
    %v467 = vmul.f32 %v466, %v76
    %v468 = vadd.f32 %v467, %v77
    %v470 = vrot.slane %v428, 7
    %v472 = vmul.f32 %v468, %v470
    %474 = vrot.lane.b32.xlu0 %v468, 98
    %v475 = vpop.permute.xlu0 %474
    %v477 = vmul.f32 %v468, %v475
    %479 = vrot.lane.b32.xlu0 %v477, 10
    %v480 = vpop.permute.xlu0 %479
    %v482 = vadd.f32 %v472, %v480
    %v483 = vtanh.pop %v482
    %485 = vrot.lane.b32.xlu0 %v483, 10
    %v486 = vpop.permute.xlu0 %485
    %v488 = vmul.f32 %v468, %v486
    %v490 = vrot.slane %v488, 4
    %491 = vrot.lane.b32.xlu0 %v490, 108
    %v492 = vpop.permute.xlu0 %491
    %v493 = vsel %vm224, %v492, 0
    %495 = vmatpush.msra.mxu0 0.0
    %496 = vmatpush.msra.mxu0 0.0
    %497 = vmatpush.msra.mxu0 0.0
    %498 = vmatpush.msra.mxu0 0.0
    %499 = vmatpush.msra.mxu0 0.0
    %500 = vmatpush.msra.mxu0 0.0
    %501 = vmatpush.msra.mxu0 0.0
    %502 = vmatpush.msra.mxu0 0.0
    %503 = vmatpush.msra.mxu0 0.0
    %504 = vmatpush.msra.mxu0 0.0
    %505 = vmatpush.msra.mxu0 0.0
    %506 = vmatpush.msra.mxu0 0.0
    %507 = vmatpush.msra.mxu0 0.0
    %508 = vmatpush.msra.mxu0 0.0
    %509 = vmatpush.msra.mxu0 %v230
    %510 = vmatpush.msra.mxu0 %v195
    %511 = vmatmul.f32.gmra.mxu0 %v493
    %v512 = vpop.f32.mrf.mxu0
    %v513 = vadd.f32 0.0, %v512
    %514 = vdwg.mxu0
    %v516 = vrot.slane %v513, 3
    %v518 = vadd.f32 %v223, %v516
    %v519 = vmul.f32 %v518, %v76
    %v520 = vtanh.pop %v519
    %v521 = vmul.f32 %v520, %v76
    %v522 = vadd.f32 %v521, %v77
    %v524 = vrot.slane %v482, 7
    %v526 = vmul.f32 %v522, %v524
    %528 = vrot.lane.b32.xlu0 %v522, 98
    %v529 = vpop.permute.xlu0 %528
    %v531 = vmul.f32 %v522, %v529
    %533 = vrot.lane.b32.xlu0 %v531, 10
    %v534 = vpop.permute.xlu0 %533
    %v536 = vadd.f32 %v526, %v534
    %v537 = vtanh.pop %v536
    %539 = vrot.lane.b32.xlu0 %v537, 10
    %v540 = vpop.permute.xlu0 %539
    %v542 = vmul.f32 %v522, %v540
    %v544 = vrot.slane %v542, 5
    %545 = vrot.lane.b32.xlu0 %v544, 108
    %v546 = vpop.permute.xlu0 %545
    %v547 = vsel %vm224, %v546, 0
    %549 = vmatpush.msra.mxu0 0.0
    %550 = vmatpush.msra.mxu0 0.0
    %551 = vmatpush.msra.mxu0 0.0
    %552 = vmatpush.msra.mxu0 0.0
    %553 = vmatpush.msra.mxu0 0.0
    %554 = vmatpush.msra.mxu0 0.0
    %555 = vmatpush.msra.mxu0 0.0
    %556 = vmatpush.msra.mxu0 0.0
    %557 = vmatpush.msra.mxu0 0.0
    %558 = vmatpush.msra.mxu0 0.0
    %559 = vmatpush.msra.mxu0 0.0
    %560 = vmatpush.msra.mxu0 0.0
    %561 = vmatpush.msra.mxu0 0.0
    %562 = vmatpush.msra.mxu0 0.0
    %563 = vmatpush.msra.mxu0 %v230
    %564 = vmatpush.msra.mxu0 %v195
    %565 = vmatmul.f32.gmra.mxu0 %v547
    %v566 = vpop.f32.mrf.mxu0
    %v567 = vadd.f32 0.0, %v566
    %568 = vdwg.mxu0
    %v570 = vrot.slane %v567, 2
    %v572 = vadd.f32 %v223, %v570
    %v573 = vmul.f32 %v572, %v76
    %v574 = vtanh.pop %v573
    %v575 = vmul.f32 %v574, %v76
    %v576 = vadd.f32 %v575, %v77
    %v578 = vrot.slane %v536, 7
    %v580 = vmul.f32 %v576, %v578
    %582 = vrot.lane.b32.xlu0 %v576, 98
    %v583 = vpop.permute.xlu0 %582
    %v585 = vmul.f32 %v576, %v583
    %587 = vrot.lane.b32.xlu0 %v585, 10
    %v588 = vpop.permute.xlu0 %587
    %v590 = vadd.f32 %v580, %v588
    %v591 = vtanh.pop %v590
    %593 = vrot.lane.b32.xlu0 %v591, 10
    %v594 = vpop.permute.xlu0 %593
    %v596 = vmul.f32 %v576, %v594
    %v598 = vrot.slane %v596, 6
    %599 = vrot.lane.b32.xlu0 %v598, 108
    %v600 = vpop.permute.xlu0 %599
    %v601 = vsel %vm224, %v600, 0
    %603 = vmatpush.msra.mxu0 0.0
    %604 = vmatpush.msra.mxu0 0.0
    %605 = vmatpush.msra.mxu0 0.0
    %606 = vmatpush.msra.mxu0 0.0
    %607 = vmatpush.msra.mxu0 0.0
    %608 = vmatpush.msra.mxu0 0.0
    %609 = vmatpush.msra.mxu0 0.0
    %610 = vmatpush.msra.mxu0 0.0
    %611 = vmatpush.msra.mxu0 0.0
    %612 = vmatpush.msra.mxu0 0.0
    %613 = vmatpush.msra.mxu0 0.0
    %614 = vmatpush.msra.mxu0 0.0
    %615 = vmatpush.msra.mxu0 0.0
    %616 = vmatpush.msra.mxu0 0.0
    %617 = vmatpush.msra.mxu0 %v230
    %618 = vmatpush.msra.mxu0 %v195
    %619 = vmatmul.f32.gmra.mxu0 %v601
    %v620 = vpop.f32.mrf.mxu0
    %v621 = vadd.f32 0.0, %v620
    %622 = vdwg.mxu0
    %v624 = vrot.slane %v621, 1
    %v626 = vadd.f32 %v223, %v624
    %v627 = vmul.f32 %v626, %v76
    %v628 = vtanh.pop %v627
    %v629 = vmul.f32 %v628, %v76
    %v630 = vadd.f32 %v629, %v77
    %v632 = vrot.slane %v590, 7
    %v634 = vmul.f32 %v630, %v632
    %636 = vrot.lane.b32.xlu0 %v630, 98
    %v637 = vpop.permute.xlu0 %636
    %v639 = vmul.f32 %v630, %v637
    %641 = vrot.lane.b32.xlu0 %v639, 10
    %v642 = vpop.permute.xlu0 %641
    %v644 = vadd.f32 %v634, %v642
    %v645 = vtanh.pop %v644
    %647 = vrot.lane.b32.xlu0 %v645, 10
    %v648 = vpop.permute.xlu0 %647
    %v650 = vmul.f32 %v630, %v648
    %vm651 = vcmask 1040384
    %v652 = vsel %vm651, %v273, %v326
    %v653 = vsel %vm228, %v652, %v380
    %vm654 = vcmask 1042432
    %v655 = vsel %vm654, %v653, %v434
    %v656 = vsel %vm131, %v655, %v488
    %vm657 = vcmask 1044480
    %v658 = vsel %vm657, %v656, %v542
    %vm659 = vcmask 1045504
    %v660 = vsel %vm659, %v658, %v596
    %vm661 = vcmask 1046528
    %v662 = vsel %vm661, %v660, %v650
    %664 = vrot.lane.b32.xlu0 %v662, 108
    %v665 = vpop.permute.xlu0 %664
    %667 = vmatpush.msra.mxu0 0.0
    %668 = vmatpush.msra.mxu0 0.0
    %669 = vmatpush.msra.mxu0 0.0
    %670 = vmatpush.msra.mxu0 0.0
    %671 = vmatpush.msra.mxu0 0.0
    %672 = vmatpush.msra.mxu0 0.0
    %673 = vmatpush.msra.mxu0 0.0
    %674 = vmatpush.msra.mxu0 0.0
    %675 = vmatpush.msra.mxu0 0.0
    %676 = vmatpush.msra.mxu0 0.0
    %677 = vmatpush.msra.mxu0 0.0
    %678 = vmatpush.msra.mxu0 0.0
    %679 = vmatpush.msra.mxu0 0.0
    %680 = vmatpush.msra.mxu0 0.0
    %681 = vmatpush.msra.mxu0 0.0
    %682 = vmatpush.msra.mxu0 %v665
    %683 = vmatmul.f32.gmra.mxu0 %v199
    %v684 = vpop.f32.mrf.mxu0
    %v685 = vadd.f32 0.0, %v684
    %686 = vdwg.mxu0
    %v687 = vsel %vm78, 1, 0
    %vm688 = vcmp.eq.s32.totalorder %v687, 1
    %v689 = vsel %vm688, %v685, %v665
    %v690 = vld [vmem:[%s4] sm:$0xff]
    %v691 = vld [vmem:[%s4 + $0x8] sm:$0x3]
    %v692 = vld [vmem:[%s5] sm:$0x1]
    %v694 = vperm.slane %v692, 0
    %v697 = vsel %vm224, %v689, 0
    %v700 = vsel %vm228, %v691, 0
    %702 = vmatpush.msra.mxu0 0.0
    %703 = vmatpush.msra.mxu0 0.0
    %704 = vmatpush.msra.mxu0 0.0
    %705 = vmatpush.msra.mxu0 0.0
    %706 = vmatpush.msra.mxu0 0.0
    %707 = vmatpush.msra.mxu0 0.0
    %708 = vmatpush.msra.mxu0 0.0
    %709 = vmatpush.msra.mxu0 0.0
    %710 = vmatpush.msra.mxu0 0.0
    %711 = vmatpush.msra.mxu0 0.0
    %712 = vmatpush.msra.mxu0 0.0
    %713 = vmatpush.msra.mxu0 0.0
    %714 = vmatpush.msra.mxu0 0.0
    %715 = vmatpush.msra.mxu0 0.0
    %716 = vmatpush.msra.mxu0 %v700
    %717 = vmatpush.msra.mxu0 %v690
    %718 = vmatmul.f32.gmra.mxu0 %v697
    %v719 = vpop.f32.mrf.mxu0
    %v720 = vadd.f32 %v694, %v719
    %721 = vdwg.mxu0
    %v722 = vld [vmem:[%s6] sm:$0xff]
    %v723 = vld [vmem:[%s6 + $0x8] sm:$0x3]
    %724 = vmatpush.msra.mxu0 0.0
    %725 = vmatpush.msra.mxu0 0.0
    %726 = vmatpush.msra.mxu0 0.0
    %727 = vmatpush.msra.mxu0 0.0
    %728 = vmatpush.msra.mxu0 0.0
    %729 = vmatpush.msra.mxu0 0.0
    %730 = vmatpush.msra.mxu0 0.0
    %731 = vmatpush.msra.mxu0 0.0
    %732 = vmatpush.msra.mxu0 0.0
    %733 = vmatpush.msra.mxu0 0.0
    %734 = vmatpush.msra.mxu0 0.0
    %735 = vmatpush.msra.mxu0 0.0
    %736 = vmatpush.msra.mxu0 0.0
    %737 = vmatpush.msra.mxu0 0.0
    %738 = vmatpush.msra.mxu0 0.0
    %739 = vmatpush.msra.mxu0 %v720
    %740 = vmatmul.f32.gmra.mxu0 %v199
    %v741 = vpop.f32.mrf.mxu0
    %v742 = vadd.f32 0.0, %v741
    %743 = vdwg.mxu0
    %v744 = vsel %vm222, %v742, %v720
    %v746 = vsel %vm228, %v723, 0
    %748 = vmatpush.msra.mxu0 0.0
    %749 = vmatpush.msra.mxu0 0.0
    %750 = vmatpush.msra.mxu0 0.0
    %751 = vmatpush.msra.mxu0 0.0
    %752 = vmatpush.msra.mxu0 0.0
    %753 = vmatpush.msra.mxu0 0.0
    %754 = vmatpush.msra.mxu0 0.0
    %755 = vmatpush.msra.mxu0 0.0
    %756 = vmatpush.msra.mxu0 0.0
    %757 = vmatpush.msra.mxu0 0.0
    %758 = vmatpush.msra.mxu0 0.0
    %759 = vmatpush.msra.mxu0 0.0
    %760 = vmatpush.msra.mxu0 0.0
    %761 = vmatpush.msra.mxu0 0.0
    %762 = vmatpush.msra.mxu0 %v746
    %763 = vmatpush.msra.mxu0 %v722
    %764 = vmatmul.f32.gmra.mxu0 %v226
    %v765 = vpop.f32.mrf.mxu0
    %v766 = vadd.f32 0.0, %v765
    %767 = vdwg.mxu0
    %v768 = vadd.f32 %v744, %v766
    %v769 = vmul.f32 %v768, %v76
    %v770 = vtanh.pop %v769
    %v771 = vmul.f32 %v770, %v76
    %v772 = vadd.f32 %v771, %v77
    %v773 = vmul.f32 %v772, 0.0
    %775 = vrot.lane.b32.xlu0 %v772, 98
    %v776 = vpop.permute.xlu0 %775
    %v778 = vmul.f32 %v772, %v776
    %780 = vrot.lane.b32.xlu0 %v778, 10
    %v781 = vpop.permute.xlu0 %780
    %v783 = vadd.f32 %v773, %v781
    %v784 = vtanh.pop %v783
    %786 = vrot.lane.b32.xlu0 %v784, 10
    %v787 = vpop.permute.xlu0 %786
    %v789 = vmul.f32 %v772, %v787
    %791 = vrot.lane.b32.xlu0 %v789, 108
    %v792 = vpop.permute.xlu0 %791
    %v793 = vsel %vm224, %v792, 0
    %795 = vmatpush.msra.mxu0 0.0
    %796 = vmatpush.msra.mxu0 0.0
    %797 = vmatpush.msra.mxu0 0.0
    %798 = vmatpush.msra.mxu0 0.0
    %799 = vmatpush.msra.mxu0 0.0
    %800 = vmatpush.msra.mxu0 0.0
    %801 = vmatpush.msra.mxu0 0.0
    %802 = vmatpush.msra.mxu0 0.0
    %803 = vmatpush.msra.mxu0 0.0
    %804 = vmatpush.msra.mxu0 0.0
    %805 = vmatpush.msra.mxu0 0.0
    %806 = vmatpush.msra.mxu0 0.0
    %807 = vmatpush.msra.mxu0 0.0
    %808 = vmatpush.msra.mxu0 0.0
    %809 = vmatpush.msra.mxu0 %v746
    %810 = vmatpush.msra.mxu0 %v722
    %811 = vmatmul.f32.gmra.mxu0 %v793
    %v812 = vpop.f32.mrf.mxu0
    %v813 = vadd.f32 0.0, %v812
    %814 = vdwg.mxu0
    %v816 = vrot.slane %v813, 7
    %v818 = vadd.f32 %v744, %v816
    %v819 = vmul.f32 %v818, %v76
    %v820 = vtanh.pop %v819
    %v821 = vmul.f32 %v820, %v76
    %v822 = vadd.f32 %v821, %v77
    %v824 = vrot.slane %v783, 7
    %v826 = vmul.f32 %v822, %v824
    %828 = vrot.lane.b32.xlu0 %v822, 98
    %v829 = vpop.permute.xlu0 %828
    %v831 = vmul.f32 %v822, %v829
    %833 = vrot.lane.b32.xlu0 %v831, 10
    %v834 = vpop.permute.xlu0 %833
    %v836 = vadd.f32 %v826, %v834
    %v837 = vtanh.pop %v836
    %839 = vrot.lane.b32.xlu0 %v837, 10
    %v840 = vpop.permute.xlu0 %839
    %v842 = vmul.f32 %v822, %v840
    %v844 = vrot.slane %v842, 1
    %v846 = vmax.f32 %v789, %v844
    %847 = vrot.lane.b32.xlu0 %v844, 108
    %v848 = vpop.permute.xlu0 %847
    %v849 = vsel %vm224, %v848, 0
    %851 = vmatpush.msra.mxu0 0.0
    %852 = vmatpush.msra.mxu0 0.0
    %853 = vmatpush.msra.mxu0 0.0
    %854 = vmatpush.msra.mxu0 0.0
    %855 = vmatpush.msra.mxu0 0.0
    %856 = vmatpush.msra.mxu0 0.0
    %857 = vmatpush.msra.mxu0 0.0
    %858 = vmatpush.msra.mxu0 0.0
    %859 = vmatpush.msra.mxu0 0.0
    %860 = vmatpush.msra.mxu0 0.0
    %861 = vmatpush.msra.mxu0 0.0
    %862 = vmatpush.msra.mxu0 0.0
    %863 = vmatpush.msra.mxu0 0.0
    %864 = vmatpush.msra.mxu0 0.0
    %865 = vmatpush.msra.mxu0 %v746
    %866 = vmatpush.msra.mxu0 %v722
    %867 = vmatmul.f32.gmra.mxu0 %v849
    %v868 = vpop.f32.mrf.mxu0
    %v869 = vadd.f32 0.0, %v868
    %870 = vdwg.mxu0
    %v872 = vrot.slane %v869, 6
    %v874 = vadd.f32 %v744, %v872
    %v875 = vmul.f32 %v874, %v76
    %v876 = vtanh.pop %v875
    %v877 = vmul.f32 %v876, %v76
    %v878 = vadd.f32 %v877, %v77
    %v880 = vrot.slane %v836, 7
    %v882 = vmul.f32 %v878, %v880
    %884 = vrot.lane.b32.xlu0 %v878, 98
    %v885 = vpop.permute.xlu0 %884
    %v887 = vmul.f32 %v878, %v885
    %889 = vrot.lane.b32.xlu0 %v887, 10
    %v890 = vpop.permute.xlu0 %889
    %v892 = vadd.f32 %v882, %v890
    %v893 = vtanh.pop %v892
    %895 = vrot.lane.b32.xlu0 %v893, 10
    %v896 = vpop.permute.xlu0 %895
    %v898 = vmul.f32 %v878, %v896
    %v900 = vrot.slane %v898, 2
    %v902 = vmax.f32 %v846, %v900
    %903 = vrot.lane.b32.xlu0 %v900, 108
    %v904 = vpop.permute.xlu0 %903
    %v905 = vsel %vm224, %v904, 0
    %907 = vmatpush.msra.mxu0 0.0
    %908 = vmatpush.msra.mxu0 0.0
    %909 = vmatpush.msra.mxu0 0.0
    %910 = vmatpush.msra.mxu0 0.0
    %911 = vmatpush.msra.mxu0 0.0
    %912 = vmatpush.msra.mxu0 0.0
    %913 = vmatpush.msra.mxu0 0.0
    %914 = vmatpush.msra.mxu0 0.0
    %915 = vmatpush.msra.mxu0 0.0
    %916 = vmatpush.msra.mxu0 0.0
    %917 = vmatpush.msra.mxu0 0.0
    %918 = vmatpush.msra.mxu0 0.0
    %919 = vmatpush.msra.mxu0 0.0
    %920 = vmatpush.msra.mxu0 0.0
    %921 = vmatpush.msra.mxu0 %v746
    %922 = vmatpush.msra.mxu0 %v722
    %923 = vmatmul.f32.gmra.mxu0 %v905
    %v924 = vpop.f32.mrf.mxu0
    %v925 = vadd.f32 0.0, %v924
    %926 = vdwg.mxu0
    %v928 = vrot.slane %v925, 5
    %v930 = vadd.f32 %v744, %v928
    %v931 = vmul.f32 %v930, %v76
    %v932 = vtanh.pop %v931
    %v933 = vmul.f32 %v932, %v76
    %v934 = vadd.f32 %v933, %v77
    %v936 = vrot.slane %v892, 7
    %v938 = vmul.f32 %v934, %v936
    %940 = vrot.lane.b32.xlu0 %v934, 98
    %v941 = vpop.permute.xlu0 %940
    %v943 = vmul.f32 %v934, %v941
    %945 = vrot.lane.b32.xlu0 %v943, 10
    %v946 = vpop.permute.xlu0 %945
    %v948 = vadd.f32 %v938, %v946
    %v949 = vtanh.pop %v948
    %951 = vrot.lane.b32.xlu0 %v949, 10
    %v952 = vpop.permute.xlu0 %951
    %v954 = vmul.f32 %v934, %v952
    %v956 = vrot.slane %v954, 3
    %v958 = vmax.f32 %v902, %v956
    %959 = vrot.lane.b32.xlu0 %v956, 108
    %v960 = vpop.permute.xlu0 %959
    %v961 = vsel %vm224, %v960, 0
    %963 = vmatpush.msra.mxu0 0.0
    %964 = vmatpush.msra.mxu0 0.0
    %965 = vmatpush.msra.mxu0 0.0
    %966 = vmatpush.msra.mxu0 0.0
    %967 = vmatpush.msra.mxu0 0.0
    %968 = vmatpush.msra.mxu0 0.0
    %969 = vmatpush.msra.mxu0 0.0
    %970 = vmatpush.msra.mxu0 0.0
    %971 = vmatpush.msra.mxu0 0.0
    %972 = vmatpush.msra.mxu0 0.0
    %973 = vmatpush.msra.mxu0 0.0
    %974 = vmatpush.msra.mxu0 0.0
    %975 = vmatpush.msra.mxu0 0.0
    %976 = vmatpush.msra.mxu0 0.0
    %977 = vmatpush.msra.mxu0 %v746
    %978 = vmatpush.msra.mxu0 %v722
    %979 = vmatmul.f32.gmra.mxu0 %v961
    %v980 = vpop.f32.mrf.mxu0
    %v981 = vadd.f32 0.0, %v980
    %982 = vdwg.mxu0
    %v984 = vrot.slane %v981, 4
    %v986 = vadd.f32 %v744, %v984
    %v987 = vmul.f32 %v986, %v76
    %v988 = vtanh.pop %v987
    %v989 = vmul.f32 %v988, %v76
    %v990 = vadd.f32 %v989, %v77
    %v992 = vrot.slane %v948, 7
    %v994 = vmul.f32 %v990, %v992
    %996 = vrot.lane.b32.xlu0 %v990, 98
    %v997 = vpop.permute.xlu0 %996
    %v999 = vmul.f32 %v990, %v997
    %1001 = vrot.lane.b32.xlu0 %v999, 10
    %v1002 = vpop.permute.xlu0 %1001
    %v1004 = vadd.f32 %v994, %v1002
    %v1005 = vtanh.pop %v1004
    %1007 = vrot.lane.b32.xlu0 %v1005, 10
    %v1008 = vpop.permute.xlu0 %1007
    %v1010 = vmul.f32 %v990, %v1008
    %v1012 = vrot.slane %v1010, 4
    %v1014 = vmax.f32 %v958, %v1012
    %1015 = vrot.lane.b32.xlu0 %v1012, 108
    %v1016 = vpop.permute.xlu0 %1015
    %v1017 = vsel %vm224, %v1016, 0
    %1019 = vmatpush.msra.mxu0 0.0
    %1020 = vmatpush.msra.mxu0 0.0
    %1021 = vmatpush.msra.mxu0 0.0
    %1022 = vmatpush.msra.mxu0 0.0
    %1023 = vmatpush.msra.mxu0 0.0
    %1024 = vmatpush.msra.mxu0 0.0
    %1025 = vmatpush.msra.mxu0 0.0
    %1026 = vmatpush.msra.mxu0 0.0
    %1027 = vmatpush.msra.mxu0 0.0
    %1028 = vmatpush.msra.mxu0 0.0
    %1029 = vmatpush.msra.mxu0 0.0
    %1030 = vmatpush.msra.mxu0 0.0
    %1031 = vmatpush.msra.mxu0 0.0
    %1032 = vmatpush.msra.mxu0 0.0
    %1033 = vmatpush.msra.mxu0 %v746
    %1034 = vmatpush.msra.mxu0 %v722
    %1035 = vmatmul.f32.gmra.mxu0 %v1017
    %v1036 = vpop.f32.mrf.mxu0
    %v1037 = vadd.f32 0.0, %v1036
    %1038 = vdwg.mxu0
    %v1040 = vrot.slane %v1037, 3
    %v1042 = vadd.f32 %v744, %v1040
    %v1043 = vmul.f32 %v1042, %v76
    %v1044 = vtanh.pop %v1043
    %v1045 = vmul.f32 %v1044, %v76
    %v1046 = vadd.f32 %v1045, %v77
    %v1048 = vrot.slane %v1004, 7
    %v1050 = vmul.f32 %v1046, %v1048
    %1052 = vrot.lane.b32.xlu0 %v1046, 98
    %v1053 = vpop.permute.xlu0 %1052
    %v1055 = vmul.f32 %v1046, %v1053
    %1057 = vrot.lane.b32.xlu0 %v1055, 10
    %v1058 = vpop.permute.xlu0 %1057
    %v1060 = vadd.f32 %v1050, %v1058
    %v1061 = vtanh.pop %v1060
    %1063 = vrot.lane.b32.xlu0 %v1061, 10
    %v1064 = vpop.permute.xlu0 %1063
    %v1066 = vmul.f32 %v1046, %v1064
    %v1068 = vrot.slane %v1066, 5
    %v1070 = vmax.f32 %v1014, %v1068
    %1071 = vrot.lane.b32.xlu0 %v1068, 108
    %v1072 = vpop.permute.xlu0 %1071
    %v1073 = vsel %vm224, %v1072, 0
    %1075 = vmatpush.msra.mxu0 0.0
    %1076 = vmatpush.msra.mxu0 0.0
    %1077 = vmatpush.msra.mxu0 0.0
    %1078 = vmatpush.msra.mxu0 0.0
    %1079 = vmatpush.msra.mxu0 0.0
    %1080 = vmatpush.msra.mxu0 0.0
    %1081 = vmatpush.msra.mxu0 0.0
    %1082 = vmatpush.msra.mxu0 0.0
    %1083 = vmatpush.msra.mxu0 0.0
    %1084 = vmatpush.msra.mxu0 0.0
    %1085 = vmatpush.msra.mxu0 0.0
    %1086 = vmatpush.msra.mxu0 0.0
    %1087 = vmatpush.msra.mxu0 0.0
    %1088 = vmatpush.msra.mxu0 0.0
    %1089 = vmatpush.msra.mxu0 %v746
    %1090 = vmatpush.msra.mxu0 %v722
    %1091 = vmatmul.f32.gmra.mxu0 %v1073
    %v1092 = vpop.f32.mrf.mxu0
    %v1093 = vadd.f32 0.0, %v1092
    %1094 = vdwg.mxu0
    %v1096 = vrot.slane %v1093, 2
    %v1098 = vadd.f32 %v744, %v1096
    %v1099 = vmul.f32 %v1098, %v76
    %v1100 = vtanh.pop %v1099
    %v1101 = vmul.f32 %v1100, %v76
    %v1102 = vadd.f32 %v1101, %v77
    %v1104 = vrot.slane %v1060, 7
    %v1106 = vmul.f32 %v1102, %v1104
    %1108 = vrot.lane.b32.xlu0 %v1102, 98
    %v1109 = vpop.permute.xlu0 %1108
    %v1111 = vmul.f32 %v1102, %v1109
    %1113 = vrot.lane.b32.xlu0 %v1111, 10
    %v1114 = vpop.permute.xlu0 %1113
    %v1116 = vadd.f32 %v1106, %v1114
    %v1117 = vtanh.pop %v1116
    %1119 = vrot.lane.b32.xlu0 %v1117, 10
    %v1120 = vpop.permute.xlu0 %1119
    %v1122 = vmul.f32 %v1102, %v1120
    %v1124 = vrot.slane %v1122, 6
    %v1126 = vmax.f32 %v1070, %v1124
    %1127 = vrot.lane.b32.xlu0 %v1124, 108
    %v1128 = vpop.permute.xlu0 %1127
    %v1129 = vsel %vm224, %v1128, 0
    %1131 = vmatpush.msra.mxu0 0.0
    %1132 = vmatpush.msra.mxu0 0.0
    %1133 = vmatpush.msra.mxu0 0.0
    %1134 = vmatpush.msra.mxu0 0.0
    %1135 = vmatpush.msra.mxu0 0.0
    %1136 = vmatpush.msra.mxu0 0.0
    %1137 = vmatpush.msra.mxu0 0.0
    %1138 = vmatpush.msra.mxu0 0.0
    %1139 = vmatpush.msra.mxu0 0.0
    %1140 = vmatpush.msra.mxu0 0.0
    %1141 = vmatpush.msra.mxu0 0.0
    %1142 = vmatpush.msra.mxu0 0.0
    %1143 = vmatpush.msra.mxu0 0.0
    %1144 = vmatpush.msra.mxu0 0.0
    %1145 = vmatpush.msra.mxu0 %v746
    %1146 = vmatpush.msra.mxu0 %v722
    %1147 = vmatmul.f32.gmra.mxu0 %v1129
    %v1148 = vpop.f32.mrf.mxu0
    %v1149 = vadd.f32 0.0, %v1148
    %1150 = vdwg.mxu0
    %v1152 = vrot.slane %v1149, 1
    %v1154 = vadd.f32 %v744, %v1152
    %v1155 = vmul.f32 %v1154, %v76
    %v1156 = vtanh.pop %v1155
    %v1157 = vmul.f32 %v1156, %v76
    %v1158 = vadd.f32 %v1157, %v77
    %v1160 = vrot.slane %v1116, 7
    %v1162 = vmul.f32 %v1158, %v1160
    %1164 = vrot.lane.b32.xlu0 %v1158, 98
    %v1165 = vpop.permute.xlu0 %1164
    %v1167 = vmul.f32 %v1158, %v1165
    %1169 = vrot.lane.b32.xlu0 %v1167, 10
    %v1170 = vpop.permute.xlu0 %1169
    %v1172 = vadd.f32 %v1162, %v1170
    %v1173 = vtanh.pop %v1172
    %1175 = vrot.lane.b32.xlu0 %v1173, 10
    %v1176 = vpop.permute.xlu0 %1175
    %v1178 = vmul.f32 %v1158, %v1176
    %v1180 = vrot.slane %v1178, 7
    %v1182 = vmax.f32 %v1126, %v1180
    %v1183 = vld [vmem:[%s7] sm:$0xff]
    %v1184 = vld [vmem:[%s7 + $0x8] sm:$0x3]
    %v1185 = vld [vmem:[#allocation2] sm:$0x1]
    %1187 = vrot.lane.b32.xlu0 %v1182, 108
    %v1188 = vpop.permute.xlu0 %1187
    %v1189 = vsel %vm224, %v1188, 0
    %v1192 = vsel %vm228, %v1184, 0
    %1194 = vmatpush.msra.mxu0 0.0
    %1195 = vmatpush.msra.mxu0 0.0
    %1196 = vmatpush.msra.mxu0 0.0
    %1197 = vmatpush.msra.mxu0 0.0
    %1198 = vmatpush.msra.mxu0 0.0
    %1199 = vmatpush.msra.mxu0 0.0
    %1200 = vmatpush.msra.mxu0 0.0
    %1201 = vmatpush.msra.mxu0 0.0
    %1202 = vmatpush.msra.mxu0 0.0
    %1203 = vmatpush.msra.mxu0 0.0
    %1204 = vmatpush.msra.mxu0 0.0
    %1205 = vmatpush.msra.mxu0 0.0
    %1206 = vmatpush.msra.mxu0 0.0
    %1207 = vmatpush.msra.mxu0 0.0
    %1208 = vmatpush.msra.mxu0 %v1192
    %1209 = vmatpush.msra.mxu0 %v1183
    %1210 = vmatmul.f32.gmra.mxu0 %v1189
    %v1211 = vpop.f32.mrf.mxu0
    %v1212 = vadd.f32 %v1185, %v1211
    %1213 = vdwg.mxu0
    %v1214 = vxor.u32 %v1212, 2147483648
    %v1215 = vmul.f32 %v1214, 1.442695
    %v1216 = vpow.pop %v1215
    %v1217 = vadd.f32 %v1216, 1.0
    %v1218 = vrcp.pop %v1217
    %v1219 = vmul.f32 %v1217, %v1218
    %v1220 = vsub.f32 1.0, %v1219
    %v1221 = vmul.f32 %v1218, %v1220
    %v1222 = vadd.f32 %v1218, %v1221
    %vm1223 = vweird.f32 %v1217
    %vm1224 = vweird.f32 %v1218
    %vm1225 = vmor %vm1223, %vm1224
    %v1226 = vsel %vm1225, %v1218, %v1222
    %v1227 = vand.u32 2147483647, %v1217
    %vm1228 = vcmp.eq.f32.partialorder %v1227, 8.507059e+37
    %v1229 = vand.u32 %v1217, 2147483648
    %v1230 = vor.u32 1.1754944e-38, %v1229
    %v1231 = vsel %vm1228, %v1230, %v1226
    %v1232 = vmul.f32 1.0, %v1231
    %vm1233 = vcmask 0
    %1234 = vst.msk [vmem:[#allocation3] sm:$0x1] %vm1233, %v1232
    // Predicated region
    $region38: #{mynn_forward_packed.1} parent=1 // pred_check
      _
    $region39: #{mynn_forward_packed.1} parent=1 // pred_check_branch
      %1236 = sbr.rel (0) target = $region41
    $region40: #{mynn_forward_packed.1} parent=1 // pred_region
      %1238 = vsyncadd [#allocation4], 0
      %s1240 = sshll.u32 [#allocation3], 4
      %s1241 = int_to_ptr.vmem [resolvable:$true] %s1240
      %s1242 = sshll.u32 %s9, 4
      %s1243 = int_to_ptr.hbm [resolvable:$true] %s1242
      %1245 = dma.vmem_to_hbm [thread:$0]  %s1241, 16, %s1243, [#allocation4]
    $region41: #{mynn_forward_packed.1} parent=1 // pred_fallthru
      _
    // Predicated region
    $region42: #{mynn_forward_packed.1} parent=1 // pred_check
      _
    $region43: #{mynn_forward_packed.1} parent=1 // pred_check_branch
      %1247 = sbr.rel (0) target = $region45
    $region44: #{mynn_forward_packed.1} parent=1 // pred_region
      %1249 = dma.done [#allocation4], 16
    $region45: #{mynn_forward_packed.1} parent=1 // pred_fallthru
      _
    %1250 = vsyncpa [#allocation4], 1

</llo_original>
